<compile_context>
chip_gen: v5e
topology: v5e:2x2
jax: 0.10.0
libtpu: 0.0.40
codegen_flags: <defaults>
</compile_context>

<pallas_src>
import functools
import math

import jax
import jax.numpy as jnp
from jax import lax
from jax.experimental import pallas as pl
from jax.experimental.pallas import tpu as pltpu

# ----------------------------- configuration --------------------------------
VOCAB_SIZE = 100
NUM_HIDDENS = 32          # H
NUM_HEADS = 2
FFN_NUM_HIDDENS = 64      # F
NUM_LAYERS = 2
MAX_LEN = 1000
BATCH = 2
SEQ = 8                   # S
LN_EPS = 1e-5

# -------------------- packed-operand layout constants -----------------------
LANE = 128
SEG_BASE = ((VOCAB_SIZE + 7) // 8) * 8   # 104: segment-embedding rows in the slab
POS_BASE = SEG_BASE + 8                  # 112: pre-tiled position rows in the slab
EMB_ROWS = LANE                          # 128-row embedding slab (K dim of multi-hot matmul)
WPACK_ROWS = 128
WPACK_COLS = 3 * LANE                    # [Wqkv | Wo | W1/W2], each 128-lane aligned
WQKV_OFF = 0
WO_OFF = LANE
WFF_OFF = 2 * LANE
BIAS_ROW = 96                            # rows 96..103: bq|bk|bv, bo, g1, b1ln, b1, b2, g2, b2ln


def _layernorm_rows(x, gamma, beta):
    m = jnp.mean(x, axis=-1, keepdims=True)
    var = jnp.mean((x - m) ** 2, axis=-1, keepdims=True)
    return (x - m) * lax.rsqrt(var + LN_EPS) * gamma + beta


# ----------------------------- Pallas kernel ---------------------------------
def _bert_encoder_kernel(num_layers, num_heads, batch, seq, hidden, ffn,
                         ids_ref,    # (3*B*S, 1) int32  [tokens | segments | per-row valid_len]
                         emb_ref,    # (128, H)   f32    packed embedding slab
                         wpack_ref,  # (L, 128, 384) f32 packed per-layer weights + biases
                         o_ref):     # (B*S, 128) f32    lanes 0:H valid (lane-dense store)
    H, F = hidden, ffn
    bs = batch * seq
    nh = num_heads
    dh = H // nh
    scale = 1.0 / math.sqrt(dh)

    # ---- fused embeddings: token + segment + position in ONE multi-hot matmul ----
    tok = ids_ref[0:bs, :]                                           # (bs, 1)
    seg = ids_ref[bs:2 * bs, :]                                      # (bs, 1)
    col = lax.broadcasted_iota(jnp.int32, (bs, EMB_ROWS), 1)
    row = lax.broadcasted_iota(jnp.int32, (bs, 1), 0)
    hot = ((col == tok) | (col == seg + SEG_BASE) | (col == row + POS_BASE))
    x = jnp.dot(hot.astype(jnp.float32), emb_ref[...],
                preferred_element_type=jnp.float32)                  # (bs, H)

    # ---- valid-length key mask, hoisted (layer & head invariant) ----
    vl3 = ids_ref[2 * bs:3 * bs, :].reshape(batch, seq, 1)           # (B, S, 1) int32
    vl3 = jnp.concatenate([vl3] * nh, axis=0)                        # (nh*B, S, 1), head-major
    kidx = lax.broadcasted_iota(jnp.int32, (nh * batch, seq, seq), 2)
    mask = kidx < vl3                                                # (nh*B, Sq, Sk)

    # ---- encoder layers, activations kept VMEM/vreg resident ----
    for l in range(num_layers):
        wqkv = wpack_ref[l, 0:H, WQKV_OFF:WQKV_OFF + LANE]           # (H,128)  [Wq|Wk|Wv|0]
        w1 = wpack_ref[l, 0:H, WFF_OFF:WFF_OFF + LANE]               # (H,128)  [W1|0]
        w2 = wpack_ref[l, H:H + F, WFF_OFF:WFF_OFF + LANE]           # (F,128)  [W2|0]
        bias = wpack_ref[l, BIAS_ROW:BIAS_ROW + 8, 0:LANE]           # (8,128)  one aligned vreg
        bqkv, bo = bias[0:1, :], bias[1:2, :]
        g1, be1 = bias[2:3, 0:H], bias[3:4, 0:H]
        b1 = bias[4:5, :]
        b2, g2, be2 = bias[5:6, 0:H], bias[6:7, 0:H], bias[7:8, 0:H]

        # --- multi-head self-attention: fused QKV, heads folded onto the batch axis ---
        qkv = jnp.dot(x, wqkv, preferred_element_type=jnp.float32) + bqkv   # (bs,128)
        qkv3 = qkv.reshape(batch, seq, LANE)
        q3 = jnp.concatenate([qkv3[:, :, h * dh:(h + 1) * dh]
                              for h in range(nh)], axis=0)                  # (nh*B,S,dh)
        k3 = jnp.concatenate([qkv3[:, :, H + h * dh:H + (h + 1) * dh]
                              for h in range(nh)], axis=0)
        v3 = jnp.concatenate([qkv3[:, :, 2 * H + h * dh:2 * H + (h + 1) * dh]
                              for h in range(nh)], axis=0)

        sc = jnp.einsum("bqd,bkd->bqk", q3, k3,
                        preferred_element_type=jnp.float32) * scale         # (nh*B,S,S)
        sc = jnp.where(mask, sc, jnp.float32(-1e6))
        sc = sc - jnp.max(sc, axis=-1, keepdims=True)
        p = jnp.exp(sc)
        p = p / jnp.sum(p, axis=-1, keepdims=True)          # exact softmax (eval parity)
        ctx = jnp.einsum("bqk,bkd->bqd", p, v3,
                         preferred_element_type=jnp.float32)                # (nh*B,S,dh)

        # Output projection as a sum of per-head partials (no lane-concat of heads);
        # Wo row blocks are 8-aligned sublane slices of the packed weight slab.
        attn = bo
        for h in range(nh):
            ctx_h = ctx[h * batch:(h + 1) * batch].reshape(bs, dh)
            wo_h = wpack_ref[l, h * dh:(h + 1) * dh, WO_OFF:WO_OFF + LANE]  # (dh,128)
            attn = attn + jnp.dot(ctx_h, wo_h, preferred_element_type=jnp.float32)
        # attn: (bs, 128), live lanes 0:H

        # --- AddNorm 1 ---
        y = _layernorm_rows(x + attn[:, 0:H], g1, be1)

        # --- position-wise FFN (W1/W2 segments zero-padded -> no masking needed) ---
        f = jnp.maximum(jnp.dot(y, w1, preferred_element_type=jnp.float32) + b1, 0.0)  # (bs,128)
        f2 = jnp.dot(f[:, 0:F], w2, preferred_element_type=jnp.float32)                # (bs,128)

        # --- AddNorm 2 ---
        x = _layernorm_rows(y + f2[:, 0:H] + b2, g2, be2)

    # ---- lane-dense (128-wide, unmasked) output store; wrapper slices lanes 0:H ----
    o_ref[...] = jnp.concatenate(
        [x, jnp.zeros((bs, LANE - H), jnp.float32)], axis=-1).astype(o_ref.dtype)


# ------------------------------ full forward ---------------------------------
def bert_encoder_forward(params, tokens, segments, valid_lens):
    B, S = tokens.shape
    H, F, L, V = NUM_HIDDENS, FFN_NUM_HIDDENS, NUM_LAYERS, VOCAB_SIZE
    bs = B * S
    assert V <= SEG_BASE and POS_BASE + bs <= EMB_ROWS
    assert 3 * H <= LANE and F <= LANE and H + F <= BIAS_ROW

    # ---------- host-side operand packing (pure layout plumbing, 3 input DMAs) ----------
    emb = jnp.zeros((EMB_ROWS, H), jnp.float32)
    emb = emb.at[0:V, :].set(params["token_embedding"])
    emb = emb.at[SEG_BASE:SEG_BASE + 2, :].set(params["segment_embedding"])
    emb = emb.at[POS_BASE:POS_BASE + bs, :].set(
        jnp.tile(params["pos_embedding"][0, :S, :], (B, 1)))

    layers = []
    for blk in params["blocks"]:
        w = jnp.zeros((WPACK_ROWS, WPACK_COLS), jnp.float32)
        w = w.at[0:H, WQKV_OFF:WQKV_OFF + 3 * H].set(
            jnp.concatenate([blk["wq"], blk["wk"], blk["wv"]], axis=1))
        w = w.at[0:H, WO_OFF:WO_OFF + H].set(blk["wo"])
        w = w.at[0:H, WFF_OFF:WFF_OFF + F].set(blk["w1"])
        w = w.at[H:H + F, WFF_OFF:WFF_OFF + H].set(blk["w2"])
        w = w.at[BIAS_ROW + 0, 0:3 * H].set(
            jnp.concatenate([blk["bq"], blk["bk"], blk["bv"]], axis=1)[0])
        w = w.at[BIAS_ROW + 1, 0:H].set(blk["bo"][0])
        w = w.at[BIAS_ROW + 2, 0:H].set(blk["ln1_g"][0])
        w = w.at[BIAS_ROW + 3, 0:H].set(blk["ln1_b"][0])
        w = w.at[BIAS_ROW + 4, 0:F].set(blk["b1"][0])
        w = w.at[BIAS_ROW + 5, 0:H].set(blk["b2"][0])
        w = w.at[BIAS_ROW + 6, 0:H].set(blk["ln2_g"][0])
        w = w.at[BIAS_ROW + 7, 0:H].set(blk["ln2_b"][0])
        layers.append(w)
    wpack = jnp.stack(layers)                                      # (L, 128, 384)

    ids = jnp.concatenate([
        tokens.reshape(-1).astype(jnp.int32),
        segments.reshape(-1).astype(jnp.int32),
        jnp.repeat(valid_lens.astype(jnp.int32), S),
    ]).reshape(3 * bs, 1)                                          # (3*B*S, 1)

    kernel = functools.partial(_bert_encoder_kernel, L, NUM_HEADS, B, S, H, F)
    # No grid: single TensorCore, everything VMEM resident (tiny shapes, latency bound).
    # TODO(synk): when batch grows, add a leading "parallel" grid axis for v7x's 2nd core.
    out = pl.pallas_call(
        kernel,
        out_shape=jax.ShapeDtypeStruct((bs, LANE), jnp.float32),
        in_specs=[
            pl.BlockSpec(memory_space=pltpu.MemorySpace.VMEM),     # ids (tok|seg|valid_len)
            pl.BlockSpec(memory_space=pltpu.MemorySpace.VMEM),     # packed embedding slab
            pl.BlockSpec(memory_space=pltpu.MemorySpace.VMEM),     # packed weight slab
        ],
        out_specs=pl.BlockSpec(memory_space=pltpu.MemorySpace.VMEM),
    )(ids, emb, wpack)
    return out[:, 0:H].reshape(B, S, H)


# --------------------------- parameter creation ------------------------------
def init_params(key):
    ks = jax.random.split(key, 4 + NUM_LAYERS)
    params = {
        "token_embedding": 0.02 * jax.random.normal(ks[0], (VOCAB_SIZE, NUM_HIDDENS), jnp.float32),
        "segment_embedding": 0.02 * jax.random.normal(ks[1], (2, NUM_HIDDENS), jnp.float32),
        "pos_embedding": 0.02 * jax.random.normal(ks[2], (1, MAX_LEN, NUM_HIDDENS), jnp.float32),
        "blocks": [],
    }
    for i in range(NUM_LAYERS):
        bk = jax.random.split(ks[4 + i], 8)
        H, F = NUM_HIDDENS, FFN_NUM_HIDDENS
        blk = {
            "wq": 0.05 * jax.random.normal(bk[0], (H, H), jnp.float32), "bq": jnp.zeros((1, H), jnp.float32),
            "wk": 0.05 * jax.random.normal(bk[1], (H, H), jnp.float32), "bk": jnp.zeros((1, H), jnp.float32),
            "wv": 0.05 * jax.random.normal(bk[2], (H, H), jnp.float32), "bv": jnp.zeros((1, H), jnp.float32),
            "wo": 0.05 * jax.random.normal(bk[3], (H, H), jnp.float32), "bo": jnp.zeros((1, H), jnp.float32),
            "ln1_g": jnp.ones((1, H), jnp.float32), "ln1_b": jnp.zeros((1, H), jnp.float32),
            "w1": 0.05 * jax.random.normal(bk[4], (H, F), jnp.float32), "b1": jnp.zeros((1, F), jnp.float32),
            "w2": 0.05 * jax.random.normal(bk[5], (F, H), jnp.float32), "b2": jnp.zeros((1, H), jnp.float32),
            "ln2_g": jnp.ones((1, H), jnp.float32), "ln2_b": jnp.zeros((1, H), jnp.float32),
        }
        params["blocks"].append(blk)
    return params


# -------------------------- pure-JAX reference -------------------------------
def _layernorm(x, g, b):
    m = jnp.mean(x, -1, keepdims=True)
    v = jnp.mean((x - m) ** 2, -1, keepdims=True)
    return (x - m) * lax.rsqrt(v + LN_EPS) * g + b


def bert_encoder_ref(params, tokens, segments, valid_lens):
    X = params["token_embedding"][tokens] + params["segment_embedding"][segments]
    X = X + params["pos_embedding"][:, :X.shape[1], :]
    B, S, H = X.shape
    dh = H // NUM_HEADS
    for p in params["blocks"]:
        q = X @ p["wq"] + p["bq"]
        k = X @ p["wk"] + p["bk"]
        v = X @ p["wv"] + p["bv"]
        qh = q.reshape(B, S, NUM_HEADS, dh).transpose(0, 2, 1, 3)
        kh = k.reshape(B, S, NUM_HEADS, dh).transpose(0, 2, 1, 3)
        vh = v.reshape(B, S, NUM_HEADS, dh).transpose(0, 2, 1, 3)
        scores = jnp.einsum("bhqd,bhkd->bhqk", qh, kh) / math.sqrt(dh)
        key_idx = jnp.arange(S)[None, None, None, :]
        mask = key_idx < valid_lens[:, None, None, None]
        scores = jnp.where(mask, scores, -1e6)
        attn = jax.nn.softmax(scores, axis=-1)
        oh = jnp.einsum("bhqk,bhkd->bhqd", attn, vh)
        o = oh.transpose(0, 2, 1, 3).reshape(B, S, H) @ p["wo"] + p["bo"]
        Y = _layernorm(X + o, p["ln1_g"], p["ln1_b"])
        f = jnp.maximum(Y @ p["w1"] + p["b1"], 0.0) @ p["w2"] + p["b2"]
        X = _layernorm(Y + f, p["ln2_g"], p["ln2_b"])
    return X


# ---------------------------------- main --------------------------------------
if __name__ == "__main__":
    key = jax.random.PRNGKey(0)
    k_par, k_tok, k_seg = jax.random.split(key, 3)

    params = init_params(k_par)
    tokens = jax.random.randint(k_tok, (BATCH, SEQ), 0, VOCAB_SIZE, dtype=jnp.int32)
    segments = jax.random.randint(k_seg, (BATCH, SEQ), 0, 2, dtype=jnp.int32)
    valid_lens = jnp.array([SEQ, 5], dtype=jnp.int32)

    out = bert_encoder_forward(params, tokens, segments, valid_lens)
    out = jax.block_until_ready(out)

    ref = jax.block_until_ready(bert_encoder_ref(params, tokens, segments, valid_lens))
    assert out.shape == (BATCH, SEQ, NUM_HIDDENS)
    assert jnp.allclose(out, ref, atol=1e-3, rtol=1e-3), "mismatch vs reference"

    print("KERNEL_OK")
</pallas_src>

<mosaic_0001>
module attributes {stable_mosaic.version = 11 : i64} {
  func.func @_bert_encoder_kernel(%arg0: memref<48x1xi32, #tpu.memory_space<vmem>>, %arg1: memref<128x32xf32, #tpu.memory_space<vmem>>, %arg2: memref<2x128x384xf32, #tpu.memory_space<vmem>>, %arg3: memref<16x128xf32, #tpu.memory_space<vmem>>) attributes {dimension_semantics = [], scalar_prefetch = 0 : i64, scratch_operands = 0 : i64, tpu.core_type = #tpu.core_type<tc>} {
    %c0 = arith.constant 0 : index
    %c0_0 = arith.constant 0 : index
    %0 = vector.load %arg0[%c0, %c0_0] : memref<48x1xi32, #tpu.memory_space<vmem>>, vector<16x1xi32>
    %c16 = arith.constant 16 : index
    %c0_1 = arith.constant 0 : index
    %1 = vector.load %arg0[%c16, %c0_1] : memref<48x1xi32, #tpu.memory_space<vmem>>, vector<16x1xi32>
    %2 = tpu.iota {dimensions = array<i32: 1>} : vector<16x128xi32>
    %3 = tpu.iota {dimensions = array<i32: 0>} : vector<16x1xi32>
    %4 = vector.broadcast %0 : vector<16x1xi32> to vector<16x128xi32>
    %5 = arith.cmpi eq, %2, %4 : vector<16x128xi32>
    %c104_i32 = arith.constant 104 : i32
    %6 = vector.broadcast %c104_i32 : i32 to vector<16x1xi32>
    %7 = arith.addi %1, %6 : vector<16x1xi32>
    %8 = vector.broadcast %7 : vector<16x1xi32> to vector<16x128xi32>
    %9 = arith.cmpi eq, %2, %8 : vector<16x128xi32>
    %10 = arith.ori %5, %9 : vector<16x128xi1>
    %c112_i32 = arith.constant 112 : i32
    %11 = vector.broadcast %c112_i32 : i32 to vector<16x1xi32>
    %12 = arith.addi %3, %11 : vector<16x1xi32>
    %13 = vector.broadcast %12 : vector<16x1xi32> to vector<16x128xi32>
    %14 = arith.cmpi eq, %2, %13 : vector<16x128xi32>
    %15 = arith.ori %10, %14 : vector<16x128xi1>
    %16 = arith.extui %15 : vector<16x128xi1> to vector<16x128xi32>
    %17 = arith.sitofp %16 : vector<16x128xi32> to vector<16x128xf32>
    %c0_2 = arith.constant 0 : index
    %c0_3 = arith.constant 0 : index
    %18 = vector.load %arg1[%c0_2, %c0_3] : memref<128x32xf32, #tpu.memory_space<vmem>>, vector<128x32xf32>
    %cst = arith.constant dense<0.000000e+00> : vector<16x32xf32>
    %19 = tpu.matmul %17, %18, %cst {dimension_numbers = #tpu.dot_dimension_numbers<[1], [0], [0], [1], [0, 0, 1, 1], [], []>} : vector<16x128xf32>, vector<128x32xf32>, vector<16x32xf32> -> vector<16x32xf32>
    %c32 = arith.constant 32 : index
    %c0_4 = arith.constant 0 : index
    %20 = vector.load %arg0[%c32, %c0_4] : memref<48x1xi32, #tpu.memory_space<vmem>>, vector<16x1xi32>
    %21 = vector.shape_cast %20 : vector<16x1xi32> to vector<2x8x1xi32>
    %22 = tpu.concatenate %21, %21 in 0 : vector<2x8x1xi32>, vector<2x8x1xi32> -> vector<4x8x1xi32>
    %23 = tpu.iota {dimensions = array<i32: 2>} : vector<4x8x8xi32>
    %24 = vector.broadcast %22 : vector<4x8x1xi32> to vector<4x8x8xi32>
    %25 = arith.cmpi slt, %23, %24 : vector<4x8x8xi32>
    %c0_5 = arith.constant 0 : index
    %c0_6 = arith.constant 0 : index
    %c0_7 = arith.constant 0 : index
    %26 = vector.load %arg2[%c0_5, %c0_6, %c0_7] : memref<2x128x384xf32, #tpu.memory_space<vmem>>, vector<1x32x128xf32>
    %27 = vector.shape_cast %26 : vector<1x32x128xf32> to vector<32x128xf32>
    %c0_8 = arith.constant 0 : index
    %c0_9 = arith.constant 0 : index
    %c256 = arith.constant 256 : index
    %28 = vector.load %arg2[%c0_8, %c0_9, %c256] : memref<2x128x384xf32, #tpu.memory_space<vmem>>, vector<1x32x128xf32>
    %29 = vector.shape_cast %28 : vector<1x32x128xf32> to vector<32x128xf32>
    %c0_10 = arith.constant 0 : index
    %c32_11 = arith.constant 32 : index
    %c256_12 = arith.constant 256 : index
    %30 = vector.load %arg2[%c0_10, %c32_11, %c256_12] : memref<2x128x384xf32, #tpu.memory_space<vmem>>, vector<1x64x128xf32>
    %31 = vector.shape_cast %30 : vector<1x64x128xf32> to vector<64x128xf32>
    %c0_13 = arith.constant 0 : index
    %c96 = arith.constant 96 : index
    %c0_14 = arith.constant 0 : index
    %32 = vector.load %arg2[%c0_13, %c96, %c0_14] : memref<2x128x384xf32, #tpu.memory_space<vmem>>, vector<1x8x128xf32>
    %33 = vector.shape_cast %32 : vector<1x8x128xf32> to vector<8x128xf32>
    %34 = vector.extract_strided_slice %33 {offsets = [0, 0], sizes = [1, 128], strides = [1, 1]} : vector<8x128xf32> to vector<1x128xf32>
    %35 = vector.extract_strided_slice %33 {offsets = [1, 0], sizes = [1, 128], strides = [1, 1]} : vector<8x128xf32> to vector<1x128xf32>
    %36 = vector.extract_strided_slice %33 {offsets = [2, 0], sizes = [1, 32], strides = [1, 1]} : vector<8x128xf32> to vector<1x32xf32>
    %37 = vector.extract_strided_slice %33 {offsets = [3, 0], sizes = [1, 32], strides = [1, 1]} : vector<8x128xf32> to vector<1x32xf32>
    %38 = vector.extract_strided_slice %33 {offsets = [4, 0], sizes = [1, 128], strides = [1, 1]} : vector<8x128xf32> to vector<1x128xf32>
    %39 = vector.extract_strided_slice %33 {offsets = [5, 0], sizes = [1, 32], strides = [1, 1]} : vector<8x128xf32> to vector<1x32xf32>
    %40 = vector.extract_strided_slice %33 {offsets = [6, 0], sizes = [1, 32], strides = [1, 1]} : vector<8x128xf32> to vector<1x32xf32>
    %41 = vector.extract_strided_slice %33 {offsets = [7, 0], sizes = [1, 32], strides = [1, 1]} : vector<8x128xf32> to vector<1x32xf32>
    %cst_15 = arith.constant dense<0.000000e+00> : vector<16x128xf32>
    %42 = tpu.matmul %19, %27, %cst_15 {dimension_numbers = #tpu.dot_dimension_numbers<[1], [0], [0], [1], [0, 0, 1, 1], [], []>} : vector<16x32xf32>, vector<32x128xf32>, vector<16x128xf32> -> vector<16x128xf32>
    %43 = vector.broadcast %34 : vector<1x128xf32> to vector<16x128xf32>
    %44 = arith.addf %42, %43 : vector<16x128xf32>
    %45 = vector.shape_cast %44 : vector<16x128xf32> to vector<2x8x128xf32>
    %46 = vector.extract_strided_slice %45 {offsets = [0, 0, 0], sizes = [2, 8, 16], strides = [1, 1, 1]} : vector<2x8x128xf32> to vector<2x8x16xf32>
    %47 = vector.extract_strided_slice %45 {offsets = [0, 0, 16], sizes = [2, 8, 16], strides = [1, 1, 1]} : vector<2x8x128xf32> to vector<2x8x16xf32>
    %48 = tpu.concatenate %46, %47 in 0 : vector<2x8x16xf32>, vector<2x8x16xf32> -> vector<4x8x16xf32>
    %49 = vector.extract_strided_slice %45 {offsets = [0, 0, 32], sizes = [2, 8, 16], strides = [1, 1, 1]} : vector<2x8x128xf32> to vector<2x8x16xf32>
    %50 = vector.extract_strided_slice %45 {offsets = [0, 0, 48], sizes = [2, 8, 16], strides = [1, 1, 1]} : vector<2x8x128xf32> to vector<2x8x16xf32>
    %51 = tpu.concatenate %49, %50 in 0 : vector<2x8x16xf32>, vector<2x8x16xf32> -> vector<4x8x16xf32>
    %52 = vector.extract_strided_slice %45 {offsets = [0, 0, 64], sizes = [2, 8, 16], strides = [1, 1, 1]} : vector<2x8x128xf32> to vector<2x8x16xf32>
    %53 = vector.extract_strided_slice %45 {offsets = [0, 0, 80], sizes = [2, 8, 16], strides = [1, 1, 1]} : vector<2x8x128xf32> to vector<2x8x16xf32>
    %54 = tpu.concatenate %52, %53 in 0 : vector<2x8x16xf32>, vector<2x8x16xf32> -> vector<4x8x16xf32>
    "tpu.trace_start"() <{level = 10 : i32, message = "bqd,bkd->bqk"}> : () -> ()
    %cst_16 = arith.constant dense<0.000000e+00> : vector<4x8x8xf32>
    %55 = tpu.matmul %48, %51, %cst_16 {dimension_numbers = #tpu.dot_dimension_numbers<[2], [2], [1], [1], [0, 0, 0, 1, 1, 1], [0], [0]>} : vector<4x8x16xf32>, vector<4x8x16xf32>, vector<4x8x8xf32> -> vector<4x8x8xf32>
    "tpu.trace_stop"() : () -> ()
    %cst_17 = arith.constant 2.500000e-01 : f32
    %56 = vector.broadcast %cst_17 : f32 to vector<4x8x8xf32>
    %57 = arith.mulf %55, %56 : vector<4x8x8xf32>
    %cst_18 = arith.constant -1.000000e+06 : f32
    %58 = vector.broadcast %cst_18 : f32 to vector<4x8x8xf32>
    %59 = arith.select %25, %57, %58 : vector<4x8x8xi1>, vector<4x8x8xf32>
    %cst_19 = arith.constant dense<0xFF800000> : vector<4x8xf32>
    %60 = vector.multi_reduction <maximumf>, %59, %cst_19 [2] : vector<4x8x8xf32> to vector<4x8xf32>
    %61 = vector.shape_cast %60 : vector<4x8xf32> to vector<4x8x1xf32>
    %62 = vector.broadcast %61 : vector<4x8x1xf32> to vector<4x8x8xf32>
    %63 = arith.subf %59, %62 : vector<4x8x8xf32>
    %64 = math.exp %63 : vector<4x8x8xf32>
    %cst_20 = arith.constant dense<0.000000e+00> : vector<4x8xf32>
    %65 = vector.multi_reduction <add>, %64, %cst_20 [2] : vector<4x8x8xf32> to vector<4x8xf32>
    %66 = vector.shape_cast %65 : vector<4x8xf32> to vector<4x8x1xf32>
    %67 = vector.broadcast %66 : vector<4x8x1xf32> to vector<4x8x8xf32>
    %68 = arith.divf %64, %67 : vector<4x8x8xf32>
    "tpu.trace_start"() <{level = 10 : i32, message = "bqk,bkd->bqd"}> : () -> ()
    %cst_21 = arith.constant dense<0.000000e+00> : vector<4x8x16xf32>
    %69 = tpu.matmul %68, %54, %cst_21 {dimension_numbers = #tpu.dot_dimension_numbers<[2], [1], [1], [2], [0, 0, 0, 1, 1, 2], [0], [0]>} : vector<4x8x8xf32>, vector<4x8x16xf32>, vector<4x8x16xf32> -> vector<4x8x16xf32>
    "tpu.trace_stop"() : () -> ()
    %70 = vector.extract_strided_slice %69 {offsets = [0, 0, 0], sizes = [2, 8, 16], strides = [1, 1, 1]} : vector<4x8x16xf32> to vector<2x8x16xf32>
    %71 = vector.shape_cast %70 : vector<2x8x16xf32> to vector<16x16xf32>
    %c0_22 = arith.constant 0 : index
    %c0_23 = arith.constant 0 : index
    %c128 = arith.constant 128 : index
    %72 = vector.load %arg2[%c0_22, %c0_23, %c128] : memref<2x128x384xf32, #tpu.memory_space<vmem>>, vector<1x16x128xf32>
    %73 = vector.shape_cast %72 : vector<1x16x128xf32> to vector<16x128xf32>
    %cst_24 = arith.constant dense<0.000000e+00> : vector<16x128xf32>
    %74 = tpu.matmul %71, %73, %cst_24 {dimension_numbers = #tpu.dot_dimension_numbers<[1], [0], [0], [1], [0, 0, 1, 1], [], []>} : vector<16x16xf32>, vector<16x128xf32>, vector<16x128xf32> -> vector<16x128xf32>
    %75 = vector.broadcast %35 : vector<1x128xf32> to vector<16x128xf32>
    %76 = arith.addf %75, %74 : vector<16x128xf32>
    %77 = vector.extract_strided_slice %69 {offsets = [2, 0, 0], sizes = [2, 8, 16], strides = [1, 1, 1]} : vector<4x8x16xf32> to vector<2x8x16xf32>
    %78 = vector.shape_cast %77 : vector<2x8x16xf32> to vector<16x16xf32>
    %c0_25 = arith.constant 0 : index
    %c16_26 = arith.constant 16 : index
    %c128_27 = arith.constant 128 : index
    %79 = vector.load %arg2[%c0_25, %c16_26, %c128_27] : memref<2x128x384xf32, #tpu.memory_space<vmem>>, vector<1x16x128xf32>
    %80 = vector.shape_cast %79 : vector<1x16x128xf32> to vector<16x128xf32>
    %cst_28 = arith.constant dense<0.000000e+00> : vector<16x128xf32>
    %81 = tpu.matmul %78, %80, %cst_28 {dimension_numbers = #tpu.dot_dimension_numbers<[1], [0], [0], [1], [0, 0, 1, 1], [], []>} : vector<16x16xf32>, vector<16x128xf32>, vector<16x128xf32> -> vector<16x128xf32>
    %82 = arith.addf %76, %81 : vector<16x128xf32>
    %83 = vector.extract_strided_slice %82 {offsets = [0, 0], sizes = [16, 32], strides = [1, 1]} : vector<16x128xf32> to vector<16x32xf32>
    %84 = arith.addf %19, %83 : vector<16x32xf32>
    %cst_29 = arith.constant dense<0.000000e+00> : vector<16xf32>
    %85 = vector.multi_reduction <add>, %84, %cst_29 [1] : vector<16x32xf32> to vector<16xf32>
    %86 = vector.shape_cast %85 : vector<16xf32> to vector<16x1xf32>
    %cst_30 = arith.constant 3.200000e+01 : f32
    %87 = vector.broadcast %cst_30 : f32 to vector<16x1xf32>
    %88 = arith.divf %86, %87 : vector<16x1xf32>
    %89 = vector.broadcast %88 : vector<16x1xf32> to vector<16x32xf32>
    %90 = arith.subf %84, %89 : vector<16x32xf32>
    %91 = arith.mulf %90, %90 : vector<16x32xf32>
    %cst_31 = arith.constant dense<0.000000e+00> : vector<16xf32>
    %92 = vector.multi_reduction <add>, %91, %cst_31 [1] : vector<16x32xf32> to vector<16xf32>
    %93 = vector.shape_cast %92 : vector<16xf32> to vector<16x1xf32>
    %cst_32 = arith.constant 3.200000e+01 : f32
    %94 = vector.broadcast %cst_32 : f32 to vector<16x1xf32>
    %95 = arith.divf %93, %94 : vector<16x1xf32>
    %96 = vector.broadcast %88 : vector<16x1xf32> to vector<16x32xf32>
    %97 = arith.subf %84, %96 : vector<16x32xf32>
    %cst_33 = arith.constant 9.99999974E-6 : f32
    %98 = vector.broadcast %cst_33 : f32 to vector<16x1xf32>
    %99 = arith.addf %95, %98 : vector<16x1xf32>
    %100 = math.rsqrt %99 : vector<16x1xf32>
    %101 = vector.broadcast %100 : vector<16x1xf32> to vector<16x32xf32>
    %102 = arith.mulf %97, %101 : vector<16x32xf32>
    %103 = vector.broadcast %36 : vector<1x32xf32> to vector<16x32xf32>
    %104 = arith.mulf %102, %103 : vector<16x32xf32>
    %105 = vector.broadcast %37 : vector<1x32xf32> to vector<16x32xf32>
    %106 = arith.addf %104, %105 : vector<16x32xf32>
    %cst_34 = arith.constant dense<0.000000e+00> : vector<16x128xf32>
    %107 = tpu.matmul %106, %29, %cst_34 {dimension_numbers = #tpu.dot_dimension_numbers<[1], [0], [0], [1], [0, 0, 1, 1], [], []>} : vector<16x32xf32>, vector<32x128xf32>, vector<16x128xf32> -> vector<16x128xf32>
    %108 = vector.broadcast %38 : vector<1x128xf32> to vector<16x128xf32>
    %109 = arith.addf %107, %108 : vector<16x128xf32>
    %cst_35 = arith.constant 0.000000e+00 : f32
    %110 = vector.broadcast %cst_35 : f32 to vector<16x128xf32>
    %111 = arith.maximumf %109, %110 : vector<16x128xf32>
    %112 = vector.extract_strided_slice %111 {offsets = [0, 0], sizes = [16, 64], strides = [1, 1]} : vector<16x128xf32> to vector<16x64xf32>
    %cst_36 = arith.constant dense<0.000000e+00> : vector<16x128xf32>
    %113 = tpu.matmul %112, %31, %cst_36 {dimension_numbers = #tpu.dot_dimension_numbers<[1], [0], [0], [1], [0, 0, 1, 1], [], []>} : vector<16x64xf32>, vector<64x128xf32>, vector<16x128xf32> -> vector<16x128xf32>
    %114 = vector.extract_strided_slice %113 {offsets = [0, 0], sizes = [16, 32], strides = [1, 1]} : vector<16x128xf32> to vector<16x32xf32>
    %115 = arith.addf %106, %114 : vector<16x32xf32>
    %116 = vector.broadcast %39 : vector<1x32xf32> to vector<16x32xf32>
    %117 = arith.addf %115, %116 : vector<16x32xf32>
    %cst_37 = arith.constant dense<0.000000e+00> : vector<16xf32>
    %118 = vector.multi_reduction <add>, %117, %cst_37 [1] : vector<16x32xf32> to vector<16xf32>
    %119 = vector.shape_cast %118 : vector<16xf32> to vector<16x1xf32>
    %cst_38 = arith.constant 3.200000e+01 : f32
    %120 = vector.broadcast %cst_38 : f32 to vector<16x1xf32>
    %121 = arith.divf %119, %120 : vector<16x1xf32>
    %122 = vector.broadcast %121 : vector<16x1xf32> to vector<16x32xf32>
    %123 = arith.subf %117, %122 : vector<16x32xf32>
    %124 = arith.mulf %123, %123 : vector<16x32xf32>
    %cst_39 = arith.constant dense<0.000000e+00> : vector<16xf32>
    %125 = vector.multi_reduction <add>, %124, %cst_39 [1] : vector<16x32xf32> to vector<16xf32>
    %126 = vector.shape_cast %125 : vector<16xf32> to vector<16x1xf32>
    %cst_40 = arith.constant 3.200000e+01 : f32
    %127 = vector.broadcast %cst_40 : f32 to vector<16x1xf32>
    %128 = arith.divf %126, %127 : vector<16x1xf32>
    %129 = vector.broadcast %121 : vector<16x1xf32> to vector<16x32xf32>
    %130 = arith.subf %117, %129 : vector<16x32xf32>
    %cst_41 = arith.constant 9.99999974E-6 : f32
    %131 = vector.broadcast %cst_41 : f32 to vector<16x1xf32>
    %132 = arith.addf %128, %131 : vector<16x1xf32>
    %133 = math.rsqrt %132 : vector<16x1xf32>
    %134 = vector.broadcast %133 : vector<16x1xf32> to vector<16x32xf32>
    %135 = arith.mulf %130, %134 : vector<16x32xf32>
    %136 = vector.broadcast %40 : vector<1x32xf32> to vector<16x32xf32>
    %137 = arith.mulf %135, %136 : vector<16x32xf32>
    %138 = vector.broadcast %41 : vector<1x32xf32> to vector<16x32xf32>
    %139 = arith.addf %137, %138 : vector<16x32xf32>
    %c1 = arith.constant 1 : index
    %c0_42 = arith.constant 0 : index
    %c0_43 = arith.constant 0 : index
    %140 = vector.load %arg2[%c1, %c0_42, %c0_43] : memref<2x128x384xf32, #tpu.memory_space<vmem>>, vector<1x32x128xf32>
    %141 = vector.shape_cast %140 : vector<1x32x128xf32> to vector<32x128xf32>
    %c1_44 = arith.constant 1 : index
    %c0_45 = arith.constant 0 : index
    %c256_46 = arith.constant 256 : index
    %142 = vector.load %arg2[%c1_44, %c0_45, %c256_46] : memref<2x128x384xf32, #tpu.memory_space<vmem>>, vector<1x32x128xf32>
    %143 = vector.shape_cast %142 : vector<1x32x128xf32> to vector<32x128xf32>
    %c1_47 = arith.constant 1 : index
    %c32_48 = arith.constant 32 : index
    %c256_49 = arith.constant 256 : index
    %144 = vector.load %arg2[%c1_47, %c32_48, %c256_49] : memref<2x128x384xf32, #tpu.memory_space<vmem>>, vector<1x64x128xf32>
    %145 = vector.shape_cast %144 : vector<1x64x128xf32> to vector<64x128xf32>
    %c1_50 = arith.constant 1 : index
    %c96_51 = arith.constant 96 : index
    %c0_52 = arith.constant 0 : index
    %146 = vector.load %arg2[%c1_50, %c96_51, %c0_52] : memref<2x128x384xf32, #tpu.memory_space<vmem>>, vector<1x8x128xf32>
    %147 = vector.shape_cast %146 : vector<1x8x128xf32> to vector<8x128xf32>
    %148 = vector.extract_strided_slice %147 {offsets = [0, 0], sizes = [1, 128], strides = [1, 1]} : vector<8x128xf32> to vector<1x128xf32>
    %149 = vector.extract_strided_slice %147 {offsets = [1, 0], sizes = [1, 128], strides = [1, 1]} : vector<8x128xf32> to vector<1x128xf32>
    %150 = vector.extract_strided_slice %147 {offsets = [2, 0], sizes = [1, 32], strides = [1, 1]} : vector<8x128xf32> to vector<1x32xf32>
    %151 = vector.extract_strided_slice %147 {offsets = [3, 0], sizes = [1, 32], strides = [1, 1]} : vector<8x128xf32> to vector<1x32xf32>
    %152 = vector.extract_strided_slice %147 {offsets = [4, 0], sizes = [1, 128], strides = [1, 1]} : vector<8x128xf32> to vector<1x128xf32>
    %153 = vector.extract_strided_slice %147 {offsets = [5, 0], sizes = [1, 32], strides = [1, 1]} : vector<8x128xf32> to vector<1x32xf32>
    %154 = vector.extract_strided_slice %147 {offsets = [6, 0], sizes = [1, 32], strides = [1, 1]} : vector<8x128xf32> to vector<1x32xf32>
    %155 = vector.extract_strided_slice %147 {offsets = [7, 0], sizes = [1, 32], strides = [1, 1]} : vector<8x128xf32> to vector<1x32xf32>
    %cst_53 = arith.constant dense<0.000000e+00> : vector<16x128xf32>
    %156 = tpu.matmul %139, %141, %cst_53 {dimension_numbers = #tpu.dot_dimension_numbers<[1], [0], [0], [1], [0, 0, 1, 1], [], []>} : vector<16x32xf32>, vector<32x128xf32>, vector<16x128xf32> -> vector<16x128xf32>
    %157 = vector.broadcast %148 : vector<1x128xf32> to vector<16x128xf32>
    %158 = arith.addf %156, %157 : vector<16x128xf32>
    %159 = vector.shape_cast %158 : vector<16x128xf32> to vector<2x8x128xf32>
    %160 = vector.extract_strided_slice %159 {offsets = [0, 0, 0], sizes = [2, 8, 16], strides = [1, 1, 1]} : vector<2x8x128xf32> to vector<2x8x16xf32>
    %161 = vector.extract_strided_slice %159 {offsets = [0, 0, 16], sizes = [2, 8, 16], strides = [1, 1, 1]} : vector<2x8x128xf32> to vector<2x8x16xf32>
    %162 = tpu.concatenate %160, %161 in 0 : vector<2x8x16xf32>, vector<2x8x16xf32> -> vector<4x8x16xf32>
    %163 = vector.extract_strided_slice %159 {offsets = [0, 0, 32], sizes = [2, 8, 16], strides = [1, 1, 1]} : vector<2x8x128xf32> to vector<2x8x16xf32>
    %164 = vector.extract_strided_slice %159 {offsets = [0, 0, 48], sizes = [2, 8, 16], strides = [1, 1, 1]} : vector<2x8x128xf32> to vector<2x8x16xf32>
    %165 = tpu.concatenate %163, %164 in 0 : vector<2x8x16xf32>, vector<2x8x16xf32> -> vector<4x8x16xf32>
    %166 = vector.extract_strided_slice %159 {offsets = [0, 0, 64], sizes = [2, 8, 16], strides = [1, 1, 1]} : vector<2x8x128xf32> to vector<2x8x16xf32>
    %167 = vector.extract_strided_slice %159 {offsets = [0, 0, 80], sizes = [2, 8, 16], strides = [1, 1, 1]} : vector<2x8x128xf32> to vector<2x8x16xf32>
    %168 = tpu.concatenate %166, %167 in 0 : vector<2x8x16xf32>, vector<2x8x16xf32> -> vector<4x8x16xf32>
    "tpu.trace_start"() <{level = 10 : i32, message = "bqd,bkd->bqk"}> : () -> ()
    %cst_54 = arith.constant dense<0.000000e+00> : vector<4x8x8xf32>
    %169 = tpu.matmul %162, %165, %cst_54 {dimension_numbers = #tpu.dot_dimension_numbers<[2], [2], [1], [1], [0, 0, 0, 1, 1, 1], [0], [0]>} : vector<4x8x16xf32>, vector<4x8x16xf32>, vector<4x8x8xf32> -> vector<4x8x8xf32>
    "tpu.trace_stop"() : () -> ()
    %cst_55 = arith.constant 2.500000e-01 : f32
    %170 = vector.broadcast %cst_55 : f32 to vector<4x8x8xf32>
    %171 = arith.mulf %169, %170 : vector<4x8x8xf32>
    %cst_56 = arith.constant -1.000000e+06 : f32
    %172 = vector.broadcast %cst_56 : f32 to vector<4x8x8xf32>
    %173 = arith.select %25, %171, %172 : vector<4x8x8xi1>, vector<4x8x8xf32>
    %cst_57 = arith.constant dense<0xFF800000> : vector<4x8xf32>
    %174 = vector.multi_reduction <maximumf>, %173, %cst_57 [2] : vector<4x8x8xf32> to vector<4x8xf32>
    %175 = vector.shape_cast %174 : vector<4x8xf32> to vector<4x8x1xf32>
    %176 = vector.broadcast %175 : vector<4x8x1xf32> to vector<4x8x8xf32>
    %177 = arith.subf %173, %176 : vector<4x8x8xf32>
    %178 = math.exp %177 : vector<4x8x8xf32>
    %cst_58 = arith.constant dense<0.000000e+00> : vector<4x8xf32>
    %179 = vector.multi_reduction <add>, %178, %cst_58 [2] : vector<4x8x8xf32> to vector<4x8xf32>
    %180 = vector.shape_cast %179 : vector<4x8xf32> to vector<4x8x1xf32>
    %181 = vector.broadcast %180 : vector<4x8x1xf32> to vector<4x8x8xf32>
    %182 = arith.divf %178, %181 : vector<4x8x8xf32>
    "tpu.trace_start"() <{level = 10 : i32, message = "bqk,bkd->bqd"}> : () -> ()
    %cst_59 = arith.constant dense<0.000000e+00> : vector<4x8x16xf32>
    %183 = tpu.matmul %182, %168, %cst_59 {dimension_numbers = #tpu.dot_dimension_numbers<[2], [1], [1], [2], [0, 0, 0, 1, 1, 2], [0], [0]>} : vector<4x8x8xf32>, vector<4x8x16xf32>, vector<4x8x16xf32> -> vector<4x8x16xf32>
    "tpu.trace_stop"() : () -> ()
    %184 = vector.extract_strided_slice %183 {offsets = [0, 0, 0], sizes = [2, 8, 16], strides = [1, 1, 1]} : vector<4x8x16xf32> to vector<2x8x16xf32>
    %185 = vector.shape_cast %184 : vector<2x8x16xf32> to vector<16x16xf32>
    %c1_60 = arith.constant 1 : index
    %c0_61 = arith.constant 0 : index
    %c128_62 = arith.constant 128 : index
    %186 = vector.load %arg2[%c1_60, %c0_61, %c128_62] : memref<2x128x384xf32, #tpu.memory_space<vmem>>, vector<1x16x128xf32>
    %187 = vector.shape_cast %186 : vector<1x16x128xf32> to vector<16x128xf32>
    %cst_63 = arith.constant dense<0.000000e+00> : vector<16x128xf32>
    %188 = tpu.matmul %185, %187, %cst_63 {dimension_numbers = #tpu.dot_dimension_numbers<[1], [0], [0], [1], [0, 0, 1, 1], [], []>} : vector<16x16xf32>, vector<16x128xf32>, vector<16x128xf32> -> vector<16x128xf32>
    %189 = vector.broadcast %149 : vector<1x128xf32> to vector<16x128xf32>
    %190 = arith.addf %189, %188 : vector<16x128xf32>
    %191 = vector.extract_strided_slice %183 {offsets = [2, 0, 0], sizes = [2, 8, 16], strides = [1, 1, 1]} : vector<4x8x16xf32> to vector<2x8x16xf32>
    %192 = vector.shape_cast %191 : vector<2x8x16xf32> to vector<16x16xf32>
    %c1_64 = arith.constant 1 : index
    %c16_65 = arith.constant 16 : index
    %c128_66 = arith.constant 128 : index
    %193 = vector.load %arg2[%c1_64, %c16_65, %c128_66] : memref<2x128x384xf32, #tpu.memory_space<vmem>>, vector<1x16x128xf32>
    %194 = vector.shape_cast %193 : vector<1x16x128xf32> to vector<16x128xf32>
    %cst_67 = arith.constant dense<0.000000e+00> : vector<16x128xf32>
    %195 = tpu.matmul %192, %194, %cst_67 {dimension_numbers = #tpu.dot_dimension_numbers<[1], [0], [0], [1], [0, 0, 1, 1], [], []>} : vector<16x16xf32>, vector<16x128xf32>, vector<16x128xf32> -> vector<16x128xf32>
    %196 = arith.addf %190, %195 : vector<16x128xf32>
    %197 = vector.extract_strided_slice %196 {offsets = [0, 0], sizes = [16, 32], strides = [1, 1]} : vector<16x128xf32> to vector<16x32xf32>
    %198 = arith.addf %139, %197 : vector<16x32xf32>
    %cst_68 = arith.constant dense<0.000000e+00> : vector<16xf32>
    %199 = vector.multi_reduction <add>, %198, %cst_68 [1] : vector<16x32xf32> to vector<16xf32>
    %200 = vector.shape_cast %199 : vector<16xf32> to vector<16x1xf32>
    %cst_69 = arith.constant 3.200000e+01 : f32
    %201 = vector.broadcast %cst_69 : f32 to vector<16x1xf32>
    %202 = arith.divf %200, %201 : vector<16x1xf32>
    %203 = vector.broadcast %202 : vector<16x1xf32> to vector<16x32xf32>
    %204 = arith.subf %198, %203 : vector<16x32xf32>
    %205 = arith.mulf %204, %204 : vector<16x32xf32>
    %cst_70 = arith.constant dense<0.000000e+00> : vector<16xf32>
    %206 = vector.multi_reduction <add>, %205, %cst_70 [1] : vector<16x32xf32> to vector<16xf32>
    %207 = vector.shape_cast %206 : vector<16xf32> to vector<16x1xf32>
    %cst_71 = arith.constant 3.200000e+01 : f32
    %208 = vector.broadcast %cst_71 : f32 to vector<16x1xf32>
    %209 = arith.divf %207, %208 : vector<16x1xf32>
    %210 = vector.broadcast %202 : vector<16x1xf32> to vector<16x32xf32>
    %211 = arith.subf %198, %210 : vector<16x32xf32>
    %cst_72 = arith.constant 9.99999974E-6 : f32
    %212 = vector.broadcast %cst_72 : f32 to vector<16x1xf32>
    %213 = arith.addf %209, %212 : vector<16x1xf32>
    %214 = math.rsqrt %213 : vector<16x1xf32>
    %215 = vector.broadcast %214 : vector<16x1xf32> to vector<16x32xf32>
    %216 = arith.mulf %211, %215 : vector<16x32xf32>
    %217 = vector.broadcast %150 : vector<1x32xf32> to vector<16x32xf32>
    %218 = arith.mulf %216, %217 : vector<16x32xf32>
    %219 = vector.broadcast %151 : vector<1x32xf32> to vector<16x32xf32>
    %220 = arith.addf %218, %219 : vector<16x32xf32>
    %cst_73 = arith.constant dense<0.000000e+00> : vector<16x128xf32>
    %221 = tpu.matmul %220, %143, %cst_73 {dimension_numbers = #tpu.dot_dimension_numbers<[1], [0], [0], [1], [0, 0, 1, 1], [], []>} : vector<16x32xf32>, vector<32x128xf32>, vector<16x128xf32> -> vector<16x128xf32>
    %222 = vector.broadcast %152 : vector<1x128xf32> to vector<16x128xf32>
    %223 = arith.addf %221, %222 : vector<16x128xf32>
    %cst_74 = arith.constant 0.000000e+00 : f32
    %224 = vector.broadcast %cst_74 : f32 to vector<16x128xf32>
    %225 = arith.maximumf %223, %224 : vector<16x128xf32>
    %226 = vector.extract_strided_slice %225 {offsets = [0, 0], sizes = [16, 64], strides = [1, 1]} : vector<16x128xf32> to vector<16x64xf32>
    %cst_75 = arith.constant dense<0.000000e+00> : vector<16x128xf32>
    %227 = tpu.matmul %226, %145, %cst_75 {dimension_numbers = #tpu.dot_dimension_numbers<[1], [0], [0], [1], [0, 0, 1, 1], [], []>} : vector<16x64xf32>, vector<64x128xf32>, vector<16x128xf32> -> vector<16x128xf32>
    %228 = vector.extract_strided_slice %227 {offsets = [0, 0], sizes = [16, 32], strides = [1, 1]} : vector<16x128xf32> to vector<16x32xf32>
    %229 = arith.addf %220, %228 : vector<16x32xf32>
    %230 = vector.broadcast %153 : vector<1x32xf32> to vector<16x32xf32>
    %231 = arith.addf %229, %230 : vector<16x32xf32>
    %cst_76 = arith.constant dense<0.000000e+00> : vector<16xf32>
    %232 = vector.multi_reduction <add>, %231, %cst_76 [1] : vector<16x32xf32> to vector<16xf32>
    %233 = vector.shape_cast %232 : vector<16xf32> to vector<16x1xf32>
    %cst_77 = arith.constant 3.200000e+01 : f32
    %234 = vector.broadcast %cst_77 : f32 to vector<16x1xf32>
    %235 = arith.divf %233, %234 : vector<16x1xf32>
    %236 = vector.broadcast %235 : vector<16x1xf32> to vector<16x32xf32>
    %237 = arith.subf %231, %236 : vector<16x32xf32>
    %238 = arith.mulf %237, %237 : vector<16x32xf32>
    %cst_78 = arith.constant dense<0.000000e+00> : vector<16xf32>
    %239 = vector.multi_reduction <add>, %238, %cst_78 [1] : vector<16x32xf32> to vector<16xf32>
    %240 = vector.shape_cast %239 : vector<16xf32> to vector<16x1xf32>
    %cst_79 = arith.constant 3.200000e+01 : f32
    %241 = vector.broadcast %cst_79 : f32 to vector<16x1xf32>
    %242 = arith.divf %240, %241 : vector<16x1xf32>
    %243 = vector.broadcast %235 : vector<16x1xf32> to vector<16x32xf32>
    %244 = arith.subf %231, %243 : vector<16x32xf32>
    %cst_80 = arith.constant 9.99999974E-6 : f32
    %245 = vector.broadcast %cst_80 : f32 to vector<16x1xf32>
    %246 = arith.addf %242, %245 : vector<16x1xf32>
    %247 = math.rsqrt %246 : vector<16x1xf32>
    %248 = vector.broadcast %247 : vector<16x1xf32> to vector<16x32xf32>
    %249 = arith.mulf %244, %248 : vector<16x32xf32>
    %250 = vector.broadcast %154 : vector<1x32xf32> to vector<16x32xf32>
    %251 = arith.mulf %249, %250 : vector<16x32xf32>
    %252 = vector.broadcast %155 : vector<1x32xf32> to vector<16x32xf32>
    %253 = arith.addf %251, %252 : vector<16x32xf32>
    %cst_81 = arith.constant 0.000000e+00 : f32
    %254 = vector.broadcast %cst_81 : f32 to vector<16x96xf32>
    %255 = tpu.concatenate %253, %254 in 1 : vector<16x32xf32>, vector<16x96xf32> -> vector<16x128xf32>
    %c0_82 = arith.constant 0 : index
    %c0_83 = arith.constant 0 : index
    %256 = vector.load %arg3[%c0_82, %c0_83] : memref<16x128xf32, #tpu.memory_space<vmem>>, vector<16x128xf32>
    tpu.vector_store %arg3[%c0_82, %c0_83], %255 {strides = array<i32>} : memref<16x128xf32, #tpu.memory_space<vmem>>, vector<16x128xf32>,
    return
  }
}

</mosaic_0001>

<llo_original>
// kernel: tpu_custom_call.1
$region0: #{tpu_custom_call.1}
  #allocation0 [shape = 'u32[]', space=smem, size = 0x4, offset = 0x4, fixed_abs, tag = 'smem constant byte address 0x4 - core index']
  #allocation1 [shape = 'u32[72,128]{1,0:T(1,128)}', space=vmem, size = 0x9000, scoped, tag = 'internal scratch']
  %s0 = inlined_call_operand.vmem [shape: s32[48,1], index: 0, kind: input, shape index: {}]
  %s1 = inlined_call_operand.vmem [shape: f32[128,32], index: 1, kind: input, shape index: {}]
  %s2 = inlined_call_operand.hbm [shape: f32[2,128,384], index: 2, kind: input, shape index: {}]
  %s3 = inlined_call_operand.hbm [shape: f32[16,128], index: 3, kind: output, shape index: {}]
  %s4 = sld [smem:[#allocation0]]
  $region26: #{tpu_custom_call.1} parent=0
    _
  %s6 = ssub.s32 1, %s4
  %s7 = scalar_select 0, %s6, %s4
  $region1: #{tpu_custom_call.1} parent=0
    #allocation2 [shape = 'u8[393216]{0}', space=vmem, size = 0x60000, scoped, tag = 'input window, operand 2, single buffered']
    #allocation3 [shape = 's32[1]{0}', space=sflag, size = 0x4, scoped, tag = 'scoped memory for tpu_custom_call.1']
    #allocation4 [shape = 's32[1]{0}', space=sflag, size = 0x4, scoped, tag = 'scoped memory for tpu_custom_call.1']
    #allocation5 [shape = 'u8[8192]{0}', space=vmem, size = 0x2000, scoped, tag = 'output window, operand 0, single buffered']
    %8 = vsyncpa [#allocation3], 0
    %9 = vsyncpa [#allocation4], 0
    // Predicated region
    $region2: #{tpu_custom_call.1} parent=1 // pred_check
      _
    $region3: #{tpu_custom_call.1} parent=1 // pred_check_branch
      %11 = sbr.rel (0) target = $region5
    $region4: #{tpu_custom_call.1} parent=1 // pred_region
      _
    $region5: #{tpu_custom_call.1} parent=1 // pred_fallthru
      _
    // Predicated region
    $region6: #{tpu_custom_call.1} parent=1 // pred_check
      _
    $region7: #{tpu_custom_call.1} parent=1 // pred_check_branch
      %13 = sbr.rel (0) target = $region9
    $region8: #{tpu_custom_call.1} parent=1 // pred_region
      _
    $region9: #{tpu_custom_call.1} parent=1 // pred_fallthru
      _
    // Predicated region
    $region10: #{tpu_custom_call.1} parent=1 // pred_check
      _
    $region11: #{tpu_custom_call.1} parent=1 // pred_check_branch
      %15 = sbr.rel (0) target = $region13
    $region12: #{tpu_custom_call.1} parent=1 // pred_region
      %17 = vsyncadd [#allocation3], 0
      %s18 = sshll.u32 %s2, 4
      %s19 = int_to_ptr.hbm [resolvable:$true] %s18
      %s20 = sshll.u32 [#allocation2], 4
      %s21 = int_to_ptr.vmem [resolvable:$true] %s20
      %26 = dma.hbm_to_vmem [thread:$0]  %s19, 12288, %s21, [#allocation3], 384, 384, 24
    $region13: #{tpu_custom_call.1} parent=1 // pred_fallthru
      _
    // Predicated region
    $region14: #{tpu_custom_call.1} parent=1 // pred_check
      _
    $region15: #{tpu_custom_call.1} parent=1 // pred_check_branch
      %28 = sbr.rel (0) target = $region17
    $region16: #{tpu_custom_call.1} parent=1 // pred_region
      %30 = dma.done [#allocation3], 12288
    $region17: #{tpu_custom_call.1} parent=1 // pred_fallthru
      _
    %v31 = vld [vmem:[%s0] sm:$0xff]
    %v32 = vld [vmem:[%s0 + $0x8] sm:$0xff]
    %v33 = vld [vmem:[%s0 + $0x10] sm:$0xff]
    %v34 = vld [vmem:[%s0 + $0x18] sm:$0xff]
    %v35 = vlaneseq
    %v36 = vand.u32 %v35, 127
    %v37 = vlaneseq
    %v38 = vshrl.u32 %v37, 7
    %v39 = vadd.s32 %v38, 8
    %40 = vset.pattern.permute.xlu0 0
    %41 = vperm.xlu0 %40, %v31
    %v42 = vpop.permute.xlu0 %41
    %43 = vset.pattern.permute.xlu0 0
    %44 = vperm.xlu0 %43, %v32
    %v45 = vpop.permute.xlu0 %44
    %vm46 = vcmp.eq.s32.totalorder %v36, %v42
    %vm47 = vcmp.eq.s32.totalorder %v36, %v45
    %v48 = vadd.s32 %v33, 104
    %v49 = vadd.s32 %v34, 104
    %50 = vset.pattern.permute.xlu0 0
    %51 = vperm.xlu0 %50, %v48
    %v52 = vpop.permute.xlu0 %51
    %53 = vset.pattern.permute.xlu0 0
    %54 = vperm.xlu0 %53, %v49
    %v55 = vpop.permute.xlu0 %54
    %vm56 = vcmp.eq.s32.totalorder %v36, %v52
    %vm57 = vcmp.eq.s32.totalorder %v36, %v55
    %vm58 = vmor %vm46, %vm56
    %vm59 = vmor %vm47, %vm57
    %v60 = vadd.s32 %v38, 112
    %v61 = vadd.s32 %v39, 112
    %vm62 = vcmp.eq.s32.totalorder %v36, %v60
    %vm63 = vcmp.eq.s32.totalorder %v36, %v61
    %vm64 = vmor %vm58, %vm62
    %vm65 = vmor %vm59, %vm63
    %v66 = vsel %vm64, 1, 0
    %v67 = vsel %vm65, 1, 0
    %v68 = vcvt.s32.f32 %v66
    %v69 = vcvt.s32.f32 %v67
    %v70 = vld [vmem:[%s1] sm:$0xff]
    %v71 = vld [vmem:[%s1 + $0x8] sm:$0xff]
    %v72 = vld [vmem:[%s1 + $0x10] sm:$0xff]
    %v73 = vld [vmem:[%s1 + $0x18] sm:$0xff]
    %v74 = vld [vmem:[%s1 + $0x20] sm:$0xff]
    %v75 = vld [vmem:[%s1 + $0x28] sm:$0xff]
    %v76 = vld [vmem:[%s1 + $0x30] sm:$0xff]
    %v77 = vld [vmem:[%s1 + $0x38] sm:$0xff]
    %v78 = vld [vmem:[%s1 + $0x40] sm:$0xff]
    %v79 = vld [vmem:[%s1 + $0x48] sm:$0xff]
    %v80 = vld [vmem:[%s1 + $0x50] sm:$0xff]
    %v81 = vld [vmem:[%s1 + $0x58] sm:$0xff]
    %v82 = vld [vmem:[%s1 + $0x60] sm:$0xff]
    %v83 = vld [vmem:[%s1 + $0x68] sm:$0xff]
    %v84 = vld [vmem:[%s1 + $0x70] sm:$0xff]
    %v85 = vld [vmem:[%s1 + $0x78] sm:$0xff]
    %86 = vmatpush.msra.mxu0 %v85
    %87 = vmatpush.msra.mxu0 %v84
    %88 = vmatpush.msra.mxu0 %v83
    %89 = vmatpush.msra.mxu0 %v82
    %90 = vmatpush.msra.mxu0 %v81
    %91 = vmatpush.msra.mxu0 %v80
    %92 = vmatpush.msra.mxu0 %v79
    %93 = vmatpush.msra.mxu0 %v78
    %94 = vmatpush.msra.mxu0 %v77
    %95 = vmatpush.msra.mxu0 %v76
    %96 = vmatpush.msra.mxu0 %v75
    %97 = vmatpush.msra.mxu0 %v74
    %98 = vmatpush.msra.mxu0 %v73
    %99 = vmatpush.msra.mxu0 %v72
    %100 = vmatpush.msra.mxu0 %v71
    %101 = vmatpush.msra.mxu0 %v70
    %102 = vmatmul.f32.gmra.mxu0 %v68
    %v103 = vpop.f32.mrf.mxu0
    %v104 = vadd.f32 0.0, %v103
    %105 = vmatmul.f32.gmra.mxu0 %v69
    %v106 = vpop.f32.mrf.mxu0
    %v107 = vadd.f32 0.0, %v106
    %108 = vdwg.mxu0
    %v109 = vld [vmem:[%s0 + $0x20] sm:$0xff]
    %v110 = vld [vmem:[%s0 + $0x28] sm:$0xff]
    %111 = vset.pattern.permute.xlu0 0
    %112 = vperm.xlu0 %111, %v109
    %v113 = vpop.permute.xlu0 %112
    %114 = vset.pattern.permute.xlu0 0
    %115 = vperm.xlu0 %114, %v110
    %v116 = vpop.permute.xlu0 %115
    %vm117 = vcmp.lt.s32.totalorder %v36, %v113
    %vm118 = vcmp.lt.s32.totalorder %v36, %v116
    %v119 = vld [vmem:[#allocation2] sm:$0xff]
    %v120 = vld [vmem:[#allocation2 + $0x18] sm:$0xff]
    %v121 = vld [vmem:[#allocation2 + $0x30] sm:$0xff]
    %v122 = vld [vmem:[#allocation2 + $0x48] sm:$0xff]
    %v123 = vld [vmem:[#allocation2 + $0x10] sm:$0xff]
    %v124 = vld [vmem:[#allocation2 + $0x28] sm:$0xff]
    %v125 = vld [vmem:[#allocation2 + $0x40] sm:$0xff]
    %v126 = vld [vmem:[#allocation2 + $0x58] sm:$0xff]
    %v127 = vld [vmem:[#allocation2 + $0x70] sm:$0xff]
    %v128 = vld [vmem:[#allocation2 + $0x88] sm:$0xff]
    %v129 = vld [vmem:[#allocation2 + $0xa0] sm:$0xff]
    %v130 = vld [vmem:[#allocation2 + $0xb8] sm:$0xff]
    %v131 = vld [vmem:[#allocation2 + $0xd0] sm:$0xff]
    %v132 = vld [vmem:[#allocation2 + $0xe8] sm:$0xff]
    %v133 = vld [vmem:[#allocation2 + $0x100] sm:$0xff]
    %v134 = vld [vmem:[#allocation2 + $0x118] sm:$0xff]
    %v135 = vld [vmem:[#allocation2 + $0x120] sm:$0xff]
    %v136 = vperm.slane %v135, 0
    %vm137 = vcmask 261120
    %v139 = vsel %vm137, %v104, 0
    %v142 = vsel %vm137, %v107, 0
    %144 = vmatpush.msra.mxu0 0.0
    %145 = vmatpush.msra.mxu0 0.0
    %146 = vmatpush.msra.mxu0 0.0
    %147 = vmatpush.msra.mxu0 0.0
    %148 = vmatpush.msra.mxu0 0.0
    %149 = vmatpush.msra.mxu0 0.0
    %150 = vmatpush.msra.mxu0 0.0
    %151 = vmatpush.msra.mxu0 0.0
    %152 = vmatpush.msra.mxu0 0.0
    %153 = vmatpush.msra.mxu0 0.0
    %154 = vmatpush.msra.mxu0 0.0
    %155 = vmatpush.msra.mxu0 0.0
    %156 = vmatpush.msra.mxu0 %v122
    %157 = vmatpush.msra.mxu0 %v121
    %158 = vmatpush.msra.mxu0 %v120
    %159 = vmatpush.msra.mxu0 %v119
    %160 = vmatmul.f32.gmra.mxu0 %v139
    %v161 = vpop.f32.mrf.mxu0
    %v162 = vadd.f32 %v136, %v161
    %163 = vmatmul.f32.gmra.mxu0 %v142
    %v164 = vpop.f32.mrf.mxu0
    %v165 = vadd.f32 %v136, %v164
    %166 = vdwg.mxu0
    %169 = vrot.lane.b32.xlu0 %v162, 112
    %v170 = vpop.permute.xlu0 %169
    %171 = vrot.lane.b32.xlu0 %v165, 112
    %v172 = vpop.permute.xlu0 %171
    %173 = vrot.lane.b32.xlu0 %v162, 96
    %v174 = vpop.permute.xlu0 %173
    %vm175 = vcmask 130048
    %v176 = vsel %vm175, %v162, 0
    %v178 = vsel %vm175, %v174, 0
    %180 = vmatpush.xpose.msra.mxu0 0.0
    %181 = vmatpush.xpose.msra.mxu0 0.0
    %182 = vmatpush.xpose.msra.mxu0 0.0
    %183 = vmatpush.xpose.msra.mxu0 0.0
    %184 = vmatpush.xpose.msra.mxu0 0.0
    %185 = vmatpush.xpose.msra.mxu0 0.0
    %186 = vmatpush.xpose.msra.mxu0 0.0
    %187 = vmatpush.xpose.msra.mxu0 0.0
    %188 = vmatpush.xpose.msra.mxu0 0.0
    %189 = vmatpush.xpose.msra.mxu0 0.0
    %190 = vmatpush.xpose.msra.mxu0 0.0
    %191 = vmatpush.xpose.msra.mxu0 0.0
    %192 = vmatpush.xpose.msra.mxu0 0.0
    %193 = vmatpush.xpose.msra.mxu0 0.0
    %194 = vmatpush.xpose.msra.mxu0 0.0
    %195 = vmatpush.xpose.msra.mxu0 %v178
    %196 = vmatmul.f32.gmra.mxu0 %v176
    %v197 = vpop.f32.mrf.mxu0
    %v198 = vadd.f32 0.0, %v197
    %199 = vdwg.mxu0
    %200 = vrot.lane.b32.xlu0 %v165, 96
    %v201 = vpop.permute.xlu0 %200
    %v202 = vsel %vm175, %v165, 0
    %v204 = vsel %vm175, %v201, 0
    %206 = vmatpush.xpose.msra.mxu0 0.0
    %207 = vmatpush.xpose.msra.mxu0 0.0
    %208 = vmatpush.xpose.msra.mxu0 0.0
    %209 = vmatpush.xpose.msra.mxu0 0.0
    %210 = vmatpush.xpose.msra.mxu0 0.0
    %211 = vmatpush.xpose.msra.mxu0 0.0
    %212 = vmatpush.xpose.msra.mxu0 0.0
    %213 = vmatpush.xpose.msra.mxu0 0.0
    %214 = vmatpush.xpose.msra.mxu0 0.0
    %215 = vmatpush.xpose.msra.mxu0 0.0
    %216 = vmatpush.xpose.msra.mxu0 0.0
    %217 = vmatpush.xpose.msra.mxu0 0.0
    %218 = vmatpush.xpose.msra.mxu0 0.0
    %219 = vmatpush.xpose.msra.mxu0 0.0
    %220 = vmatpush.xpose.msra.mxu0 0.0
    %221 = vmatpush.xpose.msra.mxu0 %v204
    %222 = vmatmul.f32.gmra.mxu0 %v202
    %v223 = vpop.f32.mrf.mxu0
    %v224 = vadd.f32 0.0, %v223
    %225 = vdwg.mxu0
    %226 = vrot.lane.b32.xlu0 %v170, 96
    %v227 = vpop.permute.xlu0 %226
    %v228 = vsel %vm175, %v170, 0
    %v230 = vsel %vm175, %v227, 0
    %232 = vmatpush.xpose.msra.mxu0 0.0
    %233 = vmatpush.xpose.msra.mxu0 0.0
    %234 = vmatpush.xpose.msra.mxu0 0.0
    %235 = vmatpush.xpose.msra.mxu0 0.0
    %236 = vmatpush.xpose.msra.mxu0 0.0
    %237 = vmatpush.xpose.msra.mxu0 0.0
    %238 = vmatpush.xpose.msra.mxu0 0.0
    %239 = vmatpush.xpose.msra.mxu0 0.0
    %240 = vmatpush.xpose.msra.mxu0 0.0
    %241 = vmatpush.xpose.msra.mxu0 0.0
    %242 = vmatpush.xpose.msra.mxu0 0.0
    %243 = vmatpush.xpose.msra.mxu0 0.0
    %244 = vmatpush.xpose.msra.mxu0 0.0
    %245 = vmatpush.xpose.msra.mxu0 0.0
    %246 = vmatpush.xpose.msra.mxu0 0.0
    %247 = vmatpush.xpose.msra.mxu0 %v230
    %248 = vmatmul.f32.gmra.mxu0 %v228
    %v249 = vpop.f32.mrf.mxu0
    %v250 = vadd.f32 0.0, %v249
    %251 = vdwg.mxu0
    %252 = vrot.lane.b32.xlu0 %v172, 96
    %v253 = vpop.permute.xlu0 %252
    %v254 = vsel %vm175, %v172, 0
    %v256 = vsel %vm175, %v253, 0
    %258 = vmatpush.xpose.msra.mxu0 0.0
    %259 = vmatpush.xpose.msra.mxu0 0.0
    %260 = vmatpush.xpose.msra.mxu0 0.0
    %261 = vmatpush.xpose.msra.mxu0 0.0
    %262 = vmatpush.xpose.msra.mxu0 0.0
    %263 = vmatpush.xpose.msra.mxu0 0.0
    %264 = vmatpush.xpose.msra.mxu0 0.0
    %265 = vmatpush.xpose.msra.mxu0 0.0
    %266 = vmatpush.xpose.msra.mxu0 0.0
    %267 = vmatpush.xpose.msra.mxu0 0.0
    %268 = vmatpush.xpose.msra.mxu0 0.0
    %269 = vmatpush.xpose.msra.mxu0 0.0
    %270 = vmatpush.xpose.msra.mxu0 0.0
    %271 = vmatpush.xpose.msra.mxu0 0.0
    %272 = vmatpush.xpose.msra.mxu0 0.0
    %273 = vmatpush.xpose.msra.mxu0 %v256
    %274 = vmatmul.f32.gmra.mxu0 %v254
    %v275 = vpop.f32.mrf.mxu0
    %v276 = vadd.f32 0.0, %v275
    %277 = vdwg.mxu0
    %v278 = vmul.f32 %v198, 0.25
    %v279 = vmul.f32 %v224, 0.25
    %v280 = vmul.f32 %v250, 0.25
    %v281 = vmul.f32 %v276, 0.25
    %v282 = vsel %vm117, %v278, -1000000.0
    %v283 = vsel %vm118, %v279, -1000000.0
    %v284 = vsel %vm117, %v280, -1000000.0
    %v285 = vsel %vm118, %v281, -1000000.0
    %vm286 = vcmask 64512
    %v287 = vsel %vm286, %v282, -inf
    %288 = vmax.xlane.f32.xlu0 %v287
    %v289 = vpop.xlane.xlu0 %288
    %v290 = vsel %vm286, %v283, -inf
    %291 = vmax.xlane.f32.xlu0 %v290
    %v292 = vpop.xlane.xlu0 %291
    %v293 = vsel %vm286, %v284, -inf
    %294 = vmax.xlane.f32.xlu0 %v293
    %v295 = vpop.xlane.xlu0 %294
    %v296 = vsel %vm286, %v285, -inf
    %297 = vmax.xlane.f32.xlu0 %v296
    %v298 = vpop.xlane.xlu0 %297
    %v299 = vsub.f32 %v282, %v289
    %v300 = vsub.f32 %v283, %v292
    %v301 = vsub.f32 %v284, %v295
    %v302 = vsub.f32 %v285, %v298
    %v303 = vmul.f32 %v299, 1.442695
    %v304 = vpow.pop %v303
    %v305 = vmul.f32 %v300, 1.442695
    %v306 = vpow.pop %v305
    %v307 = vmul.f32 %v301, 1.442695
    %v308 = vpow.pop %v307
    %v309 = vmul.f32 %v302, 1.442695
    %v310 = vpow.pop %v309
    %v311 = vsel %vm286, %v304, 0.0
    %312 = vadd.xlane.f32.xlu0 %v311
    %v313 = vpop.xlane.xlu0 %312
    %v314 = vsel %vm286, %v306, 0.0
    %315 = vadd.xlane.f32.xlu0 %v314
    %v316 = vpop.xlane.xlu0 %315
    %v317 = vsel %vm286, %v308, 0.0
    %318 = vadd.xlane.f32.xlu0 %v317
    %v319 = vpop.xlane.xlu0 %318
    %v320 = vsel %vm286, %v310, 0.0
    %321 = vadd.xlane.f32.xlu0 %v320
    %v322 = vpop.xlane.xlu0 %321
    %v323 = vrcp.pop %v313
    %v324 = vmul.f32 %v313, %v323
    %v325 = vsub.f32 1.0, %v324
    %v326 = vmul.f32 %v323, %v325
    %v327 = vadd.f32 %v323, %v326
    %vm328 = vweird.f32 %v313
    %vm329 = vweird.f32 %v323
    %vm330 = vmor %vm328, %vm329
    %v331 = vsel %vm330, %v323, %v327
    %v332 = vand.u32 2147483647, %v313
    %vm333 = vcmp.eq.f32.partialorder %v332, 8.507059e+37
    %v334 = vand.u32 %v313, 2147483648
    %v335 = vor.u32 1.1754944e-38, %v334
    %v336 = vsel %vm333, %v335, %v331
    %v337 = vmul.f32 %v304, %v336
    %v338 = vrcp.pop %v316
    %v339 = vmul.f32 %v316, %v338
    %v340 = vsub.f32 1.0, %v339
    %v341 = vmul.f32 %v338, %v340
    %v342 = vadd.f32 %v338, %v341
    %vm343 = vweird.f32 %v316
    %vm344 = vweird.f32 %v338
    %vm345 = vmor %vm343, %vm344
    %v346 = vsel %vm345, %v338, %v342
    %v347 = vand.u32 2147483647, %v316
    %vm348 = vcmp.eq.f32.partialorder %v347, 8.507059e+37
    %v349 = vand.u32 %v316, 2147483648
    %v350 = vor.u32 1.1754944e-38, %v349
    %v351 = vsel %vm348, %v350, %v346
    %v352 = vmul.f32 %v306, %v351
    %v353 = vrcp.pop %v319
    %v354 = vmul.f32 %v319, %v353
    %v355 = vsub.f32 1.0, %v354
    %v356 = vmul.f32 %v353, %v355
    %v357 = vadd.f32 %v353, %v356
    %vm358 = vweird.f32 %v319
    %vm359 = vweird.f32 %v353
    %vm360 = vmor %vm358, %vm359
    %v361 = vsel %vm360, %v353, %v357
    %v362 = vand.u32 2147483647, %v319
    %vm363 = vcmp.eq.f32.partialorder %v362, 8.507059e+37
    %v364 = vand.u32 %v319, 2147483648
    %v365 = vor.u32 1.1754944e-38, %v364
    %v366 = vsel %vm363, %v365, %v361
    %v367 = vmul.f32 %v308, %v366
    %v368 = vrcp.pop %v322
    %v369 = vmul.f32 %v322, %v368
    %v370 = vsub.f32 1.0, %v369
    %v371 = vmul.f32 %v368, %v370
    %v372 = vadd.f32 %v368, %v371
    %vm373 = vweird.f32 %v322
    %vm374 = vweird.f32 %v368
    %vm375 = vmor %vm373, %vm374
    %v376 = vsel %vm375, %v368, %v372
    %v377 = vand.u32 2147483647, %v322
    %vm378 = vcmp.eq.f32.partialorder %v377, 8.507059e+37
    %v379 = vand.u32 %v322, 2147483648
    %v380 = vor.u32 1.1754944e-38, %v379
    %v381 = vsel %vm378, %v380, %v376
    %v382 = vmul.f32 %v310, %v381
    %383 = vrot.lane.b32.xlu0 %v162, 64
    %v384 = vpop.permute.xlu0 %383
    %v387 = vsel %vm286, %v337, 0
    %389 = vmatpush.msra.mxu0 0.0
    %390 = vmatpush.msra.mxu0 0.0
    %391 = vmatpush.msra.mxu0 0.0
    %392 = vmatpush.msra.mxu0 0.0
    %393 = vmatpush.msra.mxu0 0.0
    %394 = vmatpush.msra.mxu0 0.0
    %395 = vmatpush.msra.mxu0 0.0
    %396 = vmatpush.msra.mxu0 0.0
    %397 = vmatpush.msra.mxu0 0.0
    %398 = vmatpush.msra.mxu0 0.0
    %399 = vmatpush.msra.mxu0 0.0
    %400 = vmatpush.msra.mxu0 0.0
    %401 = vmatpush.msra.mxu0 0.0
    %402 = vmatpush.msra.mxu0 0.0
    %403 = vmatpush.msra.mxu0 0.0
    %404 = vmatpush.msra.mxu0 %v384
    %405 = vmatmul.f32.gmra.mxu0 %v387
    %v406 = vpop.f32.mrf.mxu0
    %v407 = vadd.f32 0.0, %v406
    %408 = vdwg.mxu0
    %409 = vrot.lane.b32.xlu0 %v165, 64
    %v410 = vpop.permute.xlu0 %409
    %v413 = vsel %vm286, %v352, 0
    %415 = vmatpush.msra.mxu0 0.0
    %416 = vmatpush.msra.mxu0 0.0
    %417 = vmatpush.msra.mxu0 0.0
    %418 = vmatpush.msra.mxu0 0.0
    %419 = vmatpush.msra.mxu0 0.0
    %420 = vmatpush.msra.mxu0 0.0
    %421 = vmatpush.msra.mxu0 0.0
    %422 = vmatpush.msra.mxu0 0.0
    %423 = vmatpush.msra.mxu0 0.0
    %424 = vmatpush.msra.mxu0 0.0
    %425 = vmatpush.msra.mxu0 0.0
    %426 = vmatpush.msra.mxu0 0.0
    %427 = vmatpush.msra.mxu0 0.0
    %428 = vmatpush.msra.mxu0 0.0
    %429 = vmatpush.msra.mxu0 0.0
    %430 = vmatpush.msra.mxu0 %v410
    %431 = vmatmul.f32.gmra.mxu0 %v413
    %v432 = vpop.f32.mrf.mxu0
    %v433 = vadd.f32 0.0, %v432
    %434 = vdwg.mxu0
    %435 = vrot.lane.b32.xlu0 %v170, 64
    %v436 = vpop.permute.xlu0 %435
    %v439 = vsel %vm286, %v367, 0
    %441 = vmatpush.msra.mxu0 0.0
    %442 = vmatpush.msra.mxu0 0.0
    %443 = vmatpush.msra.mxu0 0.0
    %444 = vmatpush.msra.mxu0 0.0
    %445 = vmatpush.msra.mxu0 0.0
    %446 = vmatpush.msra.mxu0 0.0
    %447 = vmatpush.msra.mxu0 0.0
    %448 = vmatpush.msra.mxu0 0.0
    %449 = vmatpush.msra.mxu0 0.0
    %450 = vmatpush.msra.mxu0 0.0
    %451 = vmatpush.msra.mxu0 0.0
    %452 = vmatpush.msra.mxu0 0.0
    %453 = vmatpush.msra.mxu0 0.0
    %454 = vmatpush.msra.mxu0 0.0
    %455 = vmatpush.msra.mxu0 0.0
    %456 = vmatpush.msra.mxu0 %v436
    %457 = vmatmul.f32.gmra.mxu0 %v439
    %v458 = vpop.f32.mrf.mxu0
    %v459 = vadd.f32 0.0, %v458
    %460 = vdwg.mxu0
    %461 = vrot.lane.b32.xlu0 %v172, 64
    %v462 = vpop.permute.xlu0 %461
    %v465 = vsel %vm286, %v382, 0
    %467 = vmatpush.msra.mxu0 0.0
    %468 = vmatpush.msra.mxu0 0.0
    %469 = vmatpush.msra.mxu0 0.0
    %470 = vmatpush.msra.mxu0 0.0
    %471 = vmatpush.msra.mxu0 0.0
    %472 = vmatpush.msra.mxu0 0.0
    %473 = vmatpush.msra.mxu0 0.0
    %474 = vmatpush.msra.mxu0 0.0
    %475 = vmatpush.msra.mxu0 0.0
    %476 = vmatpush.msra.mxu0 0.0
    %477 = vmatpush.msra.mxu0 0.0
    %478 = vmatpush.msra.mxu0 0.0
    %479 = vmatpush.msra.mxu0 0.0
    %480 = vmatpush.msra.mxu0 0.0
    %481 = vmatpush.msra.mxu0 0.0
    %482 = vmatpush.msra.mxu0 %v462
    %483 = vmatmul.f32.gmra.mxu0 %v465
    %v484 = vpop.f32.mrf.mxu0
    %v485 = vadd.f32 0.0, %v484
    %486 = vdwg.mxu0
    %v487 = vld [vmem:[#allocation2 + $0x8] sm:$0xff]
    %v488 = vld [vmem:[#allocation2 + $0x20] sm:$0xff]
    %v490 = vsel %vm175, %v407, 0
    %v493 = vsel %vm175, %v433, 0
    %495 = vmatpush.msra.mxu0 0.0
    %496 = vmatpush.msra.mxu0 0.0
    %497 = vmatpush.msra.mxu0 0.0
    %498 = vmatpush.msra.mxu0 0.0
    %499 = vmatpush.msra.mxu0 0.0
    %500 = vmatpush.msra.mxu0 0.0
    %501 = vmatpush.msra.mxu0 0.0
    %502 = vmatpush.msra.mxu0 0.0
    %503 = vmatpush.msra.mxu0 0.0
    %504 = vmatpush.msra.mxu0 0.0
    %505 = vmatpush.msra.mxu0 0.0
    %506 = vmatpush.msra.mxu0 0.0
    %507 = vmatpush.msra.mxu0 0.0
    %508 = vmatpush.msra.mxu0 0.0
    %509 = vmatpush.msra.mxu0 %v488
    %510 = vmatpush.msra.mxu0 %v487
    %511 = vmatmul.f32.gmra.mxu0 %v490
    %v512 = vpop.f32.mrf.mxu0
    %v513 = vadd.f32 0.0, %v512
    %514 = vmatmul.f32.gmra.mxu0 %v493
    %v515 = vpop.f32.mrf.mxu0
    %v516 = vadd.f32 0.0, %v515
    %517 = vdwg.mxu0
    %v518 = vperm.slane %v135, 1
    %v519 = vadd.f32 %v518, %v513
    %v520 = vadd.f32 %v518, %v516
    %v521 = vld [vmem:[#allocation2 + $0x38] sm:$0xff]
    %v522 = vld [vmem:[#allocation2 + $0x50] sm:$0xff]
    %v524 = vsel %vm175, %v459, 0
    %v527 = vsel %vm175, %v485, 0
    %529 = vmatpush.msra.mxu0 0.0
    %530 = vmatpush.msra.mxu0 0.0
    %531 = vmatpush.msra.mxu0 0.0
    %532 = vmatpush.msra.mxu0 0.0
    %533 = vmatpush.msra.mxu0 0.0
    %534 = vmatpush.msra.mxu0 0.0
    %535 = vmatpush.msra.mxu0 0.0
    %536 = vmatpush.msra.mxu0 0.0
    %537 = vmatpush.msra.mxu0 0.0
    %538 = vmatpush.msra.mxu0 0.0
    %539 = vmatpush.msra.mxu0 0.0
    %540 = vmatpush.msra.mxu0 0.0
    %541 = vmatpush.msra.mxu0 0.0
    %542 = vmatpush.msra.mxu0 0.0
    %543 = vmatpush.msra.mxu0 %v522
    %544 = vmatpush.msra.mxu0 %v521
    %545 = vmatmul.f32.gmra.mxu0 %v524
    %v546 = vpop.f32.mrf.mxu0
    %v547 = vadd.f32 0.0, %v546
    %548 = vmatmul.f32.gmra.mxu0 %v527
    %v549 = vpop.f32.mrf.mxu0
    %v550 = vadd.f32 0.0, %v549
    %551 = vdwg.mxu0
    %v552 = vadd.f32 %v519, %v547
    %v553 = vadd.f32 %v520, %v550
    %v554 = vadd.f32 %v104, %v552
    %v555 = vadd.f32 %v107, %v553
    %v556 = vsel %vm137, %v554, 0.0
    %557 = vadd.xlane.f32.xlu0 %v556
    %v558 = vpop.xlane.xlu0 %557
    %v559 = vsel %vm137, %v555, 0.0
    %560 = vadd.xlane.f32.xlu0 %v559
    %v561 = vpop.xlane.xlu0 %560
    %v562 = vrcp.pop 32.0
    %v563 = vmul.f32 32.0, %v562
    %v564 = vsub.f32 1.0, %v563
    %v565 = vmul.f32 %v562, %v564
    %v566 = vadd.f32 %v562, %v565
    %vm567 = vweird.f32 %v562
    %v568 = vsel %vm567, %v562, %v566
    %v569 = vmul.f32 %v558, %v568
    %v570 = vmul.f32 %v561, %v568
    %v571 = vsub.f32 %v554, %v569
    %v572 = vsub.f32 %v555, %v570
    %v573 = vmul.f32 %v571, %v571
    %v574 = vmul.f32 %v572, %v572
    %v575 = vsel %vm137, %v573, 0.0
    %576 = vadd.xlane.f32.xlu0 %v575
    %v577 = vpop.xlane.xlu0 %576
    %v578 = vsel %vm137, %v574, 0.0
    %579 = vadd.xlane.f32.xlu0 %v578
    %v580 = vpop.xlane.xlu0 %579
    %v581 = vmul.f32 %v577, %v568
    %v582 = vmul.f32 %v580, %v568
    %v583 = vadd.f32 %v581, 1e-05
    %v584 = vadd.f32 %v582, 1e-05
    %v585 = vrsqrt.pop %v583
    %v586 = vmul.f32 %v585, %v583
    %v587 = vmul.f32 %v586, %v585
    %v588 = vmul.f32 0.5, %v587
    %v589 = vsub.f32 1.5, %v588
    %v590 = vmul.f32 %v585, %v589
    %vm591 = vweird.f32 %v583
    %vm592 = vweird.f32 %v585
    %vm593 = vmor %vm591, %vm592
    %v594 = vsel %vm593, %v585, %v590
    %v595 = vrsqrt.pop %v584
    %v596 = vmul.f32 %v595, %v584
    %v597 = vmul.f32 %v596, %v595
    %v598 = vmul.f32 0.5, %v597
    %v599 = vsub.f32 1.5, %v598
    %v600 = vmul.f32 %v595, %v599
    %vm601 = vweird.f32 %v584
    %vm602 = vweird.f32 %v595
    %vm603 = vmor %vm601, %vm602
    %v604 = vsel %vm603, %v595, %v600
    %v605 = vmul.f32 %v571, %v594
    %v606 = vmul.f32 %v572, %v604
    %v607 = vperm.slane %v135, 2
    %v608 = vmul.f32 %v605, %v607
    %v609 = vmul.f32 %v606, %v607
    %v610 = vperm.slane %v135, 3
    %v611 = vadd.f32 %v608, %v610
    %v612 = vadd.f32 %v609, %v610
    %v613 = vperm.slane %v135, 4
    %v615 = vsel %vm137, %v611, 0
    %v618 = vsel %vm137, %v612, 0
    %620 = vmatpush.msra.mxu0 0.0
    %621 = vmatpush.msra.mxu0 0.0
    %622 = vmatpush.msra.mxu0 0.0
    %623 = vmatpush.msra.mxu0 0.0
    %624 = vmatpush.msra.mxu0 0.0
    %625 = vmatpush.msra.mxu0 0.0
    %626 = vmatpush.msra.mxu0 0.0
    %627 = vmatpush.msra.mxu0 0.0
    %628 = vmatpush.msra.mxu0 0.0
    %629 = vmatpush.msra.mxu0 0.0
    %630 = vmatpush.msra.mxu0 0.0
    %631 = vmatpush.msra.mxu0 0.0
    %632 = vmatpush.msra.mxu0 %v126
    %633 = vmatpush.msra.mxu0 %v125
    %634 = vmatpush.msra.mxu0 %v124
    %635 = vmatpush.msra.mxu0 %v123
    %636 = vmatmul.f32.gmra.mxu0 %v615
    %v637 = vpop.f32.mrf.mxu0
    %v638 = vadd.f32 %v613, %v637
    %639 = vmatmul.f32.gmra.mxu0 %v618
    %v640 = vpop.f32.mrf.mxu0
    %v641 = vadd.f32 %v613, %v640
    %642 = vdwg.mxu0
    %v643 = vmax.f32 %v638, 0.0
    %v644 = vmax.f32 %v641, 0.0
    %vm645 = vcmask 523264
    %v647 = vsel %vm645, %v643, 0
    %v650 = vsel %vm645, %v644, 0
    %652 = vmatpush.msra.mxu0 0.0
    %653 = vmatpush.msra.mxu0 0.0
    %654 = vmatpush.msra.mxu0 0.0
    %655 = vmatpush.msra.mxu0 0.0
    %656 = vmatpush.msra.mxu0 0.0
    %657 = vmatpush.msra.mxu0 0.0
    %658 = vmatpush.msra.mxu0 0.0
    %659 = vmatpush.msra.mxu0 0.0
    %660 = vmatpush.msra.mxu0 %v134
    %661 = vmatpush.msra.mxu0 %v133
    %662 = vmatpush.msra.mxu0 %v132
    %663 = vmatpush.msra.mxu0 %v131
    %664 = vmatpush.msra.mxu0 %v130
    %665 = vmatpush.msra.mxu0 %v129
    %666 = vmatpush.msra.mxu0 %v128
    %667 = vmatpush.msra.mxu0 %v127
    %668 = vmatmul.f32.gmra.mxu0 %v647
    %v669 = vpop.f32.mrf.mxu0
    %v670 = vadd.f32 0.0, %v669
    %671 = vmatmul.f32.gmra.mxu0 %v650
    %v672 = vpop.f32.mrf.mxu0
    %v673 = vadd.f32 0.0, %v672
    %674 = vdwg.mxu0
    %v675 = vadd.f32 %v611, %v670
    %v676 = vadd.f32 %v612, %v673
    %v677 = vperm.slane %v135, 5
    %v678 = vadd.f32 %v675, %v677
    %v679 = vadd.f32 %v676, %v677
    %v680 = vsel %vm137, %v678, 0.0
    %681 = vadd.xlane.f32.xlu0 %v680
    %v682 = vpop.xlane.xlu0 %681
    %v683 = vsel %vm137, %v679, 0.0
    %684 = vadd.xlane.f32.xlu0 %v683
    %v685 = vpop.xlane.xlu0 %684
    %v686 = vmul.f32 %v682, %v568
    %v687 = vmul.f32 %v685, %v568
    %v688 = vsub.f32 %v678, %v686
    %v689 = vsub.f32 %v679, %v687
    %v690 = vmul.f32 %v688, %v688
    %v691 = vmul.f32 %v689, %v689
    %v692 = vsel %vm137, %v690, 0.0
    %693 = vadd.xlane.f32.xlu0 %v692
    %v694 = vpop.xlane.xlu0 %693
    %v695 = vsel %vm137, %v691, 0.0
    %696 = vadd.xlane.f32.xlu0 %v695
    %v697 = vpop.xlane.xlu0 %696
    %v698 = vmul.f32 %v694, %v568
    %v699 = vmul.f32 %v697, %v568
    %v700 = vadd.f32 %v698, 1e-05
    %v701 = vadd.f32 %v699, 1e-05
    %v702 = vrsqrt.pop %v700
    %v703 = vmul.f32 %v702, %v700
    %v704 = vmul.f32 %v703, %v702
    %v705 = vmul.f32 0.5, %v704
    %v706 = vsub.f32 1.5, %v705
    %v707 = vmul.f32 %v702, %v706
    %vm708 = vweird.f32 %v700
    %vm709 = vweird.f32 %v702
    %vm710 = vmor %vm708, %vm709
    %v711 = vsel %vm710, %v702, %v707
    %v712 = vrsqrt.pop %v701
    %v713 = vmul.f32 %v712, %v701
    %v714 = vmul.f32 %v713, %v712
    %v715 = vmul.f32 0.5, %v714
    %v716 = vsub.f32 1.5, %v715
    %v717 = vmul.f32 %v712, %v716
    %vm718 = vweird.f32 %v701
    %vm719 = vweird.f32 %v712
    %vm720 = vmor %vm718, %vm719
    %v721 = vsel %vm720, %v712, %v717
    %v722 = vmul.f32 %v688, %v711
    %v723 = vmul.f32 %v689, %v721
    %v724 = vperm.slane %v135, 6
    %v725 = vmul.f32 %v722, %v724
    %v726 = vmul.f32 %v723, %v724
    %v727 = vperm.slane %v135, 7
    %v728 = vadd.f32 %v725, %v727
    %v729 = vadd.f32 %v726, %v727
    %s730 = scalar_lea.vmem [#allocation2], 384
    %v731 = vld [vmem:[%s730] sm:$0xff]
    %v732 = vld [vmem:[%s730 + $0x18] sm:$0xff]
    %v733 = vld [vmem:[%s730 + $0x30] sm:$0xff]
    %v734 = vld [vmem:[%s730 + $0x48] sm:$0xff]
    %v735 = vld [vmem:[%s730 + $0x10] sm:$0xff]
    %v736 = vld [vmem:[%s730 + $0x28] sm:$0xff]
    %v737 = vld [vmem:[%s730 + $0x40] sm:$0xff]
    %v738 = vld [vmem:[%s730 + $0x58] sm:$0xff]
    %v739 = vld [vmem:[%s730 + $0x70] sm:$0xff]
    %v740 = vld [vmem:[%s730 + $0x88] sm:$0xff]
    %v741 = vld [vmem:[%s730 + $0xa0] sm:$0xff]
    %v742 = vld [vmem:[%s730 + $0xb8] sm:$0xff]
    %v743 = vld [vmem:[%s730 + $0xd0] sm:$0xff]
    %v744 = vld [vmem:[%s730 + $0xe8] sm:$0xff]
    %v745 = vld [vmem:[%s730 + $0x100] sm:$0xff]
    %v746 = vld [vmem:[%s730 + $0x118] sm:$0xff]
    %v747 = vld [vmem:[%s730 + $0x120] sm:$0xff]
    %v748 = vperm.slane %v747, 0
    %v750 = vsel %vm137, %v728, 0
    %v753 = vsel %vm137, %v729, 0
    %755 = vmatpush.msra.mxu0 0.0
    %756 = vmatpush.msra.mxu0 0.0
    %757 = vmatpush.msra.mxu0 0.0
    %758 = vmatpush.msra.mxu0 0.0
    %759 = vmatpush.msra.mxu0 0.0
    %760 = vmatpush.msra.mxu0 0.0
    %761 = vmatpush.msra.mxu0 0.0
    %762 = vmatpush.msra.mxu0 0.0
    %763 = vmatpush.msra.mxu0 0.0
    %764 = vmatpush.msra.mxu0 0.0
    %765 = vmatpush.msra.mxu0 0.0
    %766 = vmatpush.msra.mxu0 0.0
    %767 = vmatpush.msra.mxu0 %v734
    %768 = vmatpush.msra.mxu0 %v733
    %769 = vmatpush.msra.mxu0 %v732
    %770 = vmatpush.msra.mxu0 %v731
    %771 = vmatmul.f32.gmra.mxu0 %v750
    %v772 = vpop.f32.mrf.mxu0
    %v773 = vadd.f32 %v748, %v772
    %774 = vmatmul.f32.gmra.mxu0 %v753
    %v775 = vpop.f32.mrf.mxu0
    %v776 = vadd.f32 %v748, %v775
    %777 = vdwg.mxu0
    %780 = vrot.lane.b32.xlu0 %v773, 112
    %v781 = vpop.permute.xlu0 %780
    %782 = vrot.lane.b32.xlu0 %v776, 112
    %v783 = vpop.permute.xlu0 %782
    %784 = vrot.lane.b32.xlu0 %v773, 96
    %v785 = vpop.permute.xlu0 %784
    %v786 = vsel %vm175, %v773, 0
    %v788 = vsel %vm175, %v785, 0
    %790 = vmatpush.xpose.msra.mxu0 0.0
    %791 = vmatpush.xpose.msra.mxu0 0.0
    %792 = vmatpush.xpose.msra.mxu0 0.0
    %793 = vmatpush.xpose.msra.mxu0 0.0
    %794 = vmatpush.xpose.msra.mxu0 0.0
    %795 = vmatpush.xpose.msra.mxu0 0.0
    %796 = vmatpush.xpose.msra.mxu0 0.0
    %797 = vmatpush.xpose.msra.mxu0 0.0
    %798 = vmatpush.xpose.msra.mxu0 0.0
    %799 = vmatpush.xpose.msra.mxu0 0.0
    %800 = vmatpush.xpose.msra.mxu0 0.0
    %801 = vmatpush.xpose.msra.mxu0 0.0
    %802 = vmatpush.xpose.msra.mxu0 0.0
    %803 = vmatpush.xpose.msra.mxu0 0.0
    %804 = vmatpush.xpose.msra.mxu0 0.0
    %805 = vmatpush.xpose.msra.mxu0 %v788
    %806 = vmatmul.f32.gmra.mxu0 %v786
    %v807 = vpop.f32.mrf.mxu0
    %v808 = vadd.f32 0.0, %v807
    %809 = vdwg.mxu0
    %810 = vrot.lane.b32.xlu0 %v776, 96
    %v811 = vpop.permute.xlu0 %810
    %v812 = vsel %vm175, %v776, 0
    %v814 = vsel %vm175, %v811, 0
    %816 = vmatpush.xpose.msra.mxu0 0.0
    %817 = vmatpush.xpose.msra.mxu0 0.0
    %818 = vmatpush.xpose.msra.mxu0 0.0
    %819 = vmatpush.xpose.msra.mxu0 0.0
    %820 = vmatpush.xpose.msra.mxu0 0.0
    %821 = vmatpush.xpose.msra.mxu0 0.0
    %822 = vmatpush.xpose.msra.mxu0 0.0
    %823 = vmatpush.xpose.msra.mxu0 0.0
    %824 = vmatpush.xpose.msra.mxu0 0.0
    %825 = vmatpush.xpose.msra.mxu0 0.0
    %826 = vmatpush.xpose.msra.mxu0 0.0
    %827 = vmatpush.xpose.msra.mxu0 0.0
    %828 = vmatpush.xpose.msra.mxu0 0.0
    %829 = vmatpush.xpose.msra.mxu0 0.0
    %830 = vmatpush.xpose.msra.mxu0 0.0
    %831 = vmatpush.xpose.msra.mxu0 %v814
    %832 = vmatmul.f32.gmra.mxu0 %v812
    %v833 = vpop.f32.mrf.mxu0
    %v834 = vadd.f32 0.0, %v833
    %835 = vdwg.mxu0
    %836 = vrot.lane.b32.xlu0 %v781, 96
    %v837 = vpop.permute.xlu0 %836
    %v838 = vsel %vm175, %v781, 0
    %v840 = vsel %vm175, %v837, 0
    %842 = vmatpush.xpose.msra.mxu0 0.0
    %843 = vmatpush.xpose.msra.mxu0 0.0
    %844 = vmatpush.xpose.msra.mxu0 0.0
    %845 = vmatpush.xpose.msra.mxu0 0.0
    %846 = vmatpush.xpose.msra.mxu0 0.0
    %847 = vmatpush.xpose.msra.mxu0 0.0
    %848 = vmatpush.xpose.msra.mxu0 0.0
    %849 = vmatpush.xpose.msra.mxu0 0.0
    %850 = vmatpush.xpose.msra.mxu0 0.0
    %851 = vmatpush.xpose.msra.mxu0 0.0
    %852 = vmatpush.xpose.msra.mxu0 0.0
    %853 = vmatpush.xpose.msra.mxu0 0.0
    %854 = vmatpush.xpose.msra.mxu0 0.0
    %855 = vmatpush.xpose.msra.mxu0 0.0
    %856 = vmatpush.xpose.msra.mxu0 0.0
    %857 = vmatpush.xpose.msra.mxu0 %v840
    %858 = vmatmul.f32.gmra.mxu0 %v838
    %v859 = vpop.f32.mrf.mxu0
    %v860 = vadd.f32 0.0, %v859
    %861 = vdwg.mxu0
    %862 = vrot.lane.b32.xlu0 %v783, 96
    %v863 = vpop.permute.xlu0 %862
    %v864 = vsel %vm175, %v783, 0
    %v866 = vsel %vm175, %v863, 0
    %868 = vmatpush.xpose.msra.mxu0 0.0
    %869 = vmatpush.xpose.msra.mxu0 0.0
    %870 = vmatpush.xpose.msra.mxu0 0.0
    %871 = vmatpush.xpose.msra.mxu0 0.0
    %872 = vmatpush.xpose.msra.mxu0 0.0
    %873 = vmatpush.xpose.msra.mxu0 0.0
    %874 = vmatpush.xpose.msra.mxu0 0.0
    %875 = vmatpush.xpose.msra.mxu0 0.0
    %876 = vmatpush.xpose.msra.mxu0 0.0
    %877 = vmatpush.xpose.msra.mxu0 0.0
    %878 = vmatpush.xpose.msra.mxu0 0.0
    %879 = vmatpush.xpose.msra.mxu0 0.0
    %880 = vmatpush.xpose.msra.mxu0 0.0
    %881 = vmatpush.xpose.msra.mxu0 0.0
    %882 = vmatpush.xpose.msra.mxu0 0.0
    %883 = vmatpush.xpose.msra.mxu0 %v866
    %884 = vmatmul.f32.gmra.mxu0 %v864
    %v885 = vpop.f32.mrf.mxu0
    %v886 = vadd.f32 0.0, %v885
    %887 = vdwg.mxu0
    %v888 = vmul.f32 %v808, 0.25
    %v889 = vmul.f32 %v834, 0.25
    %v890 = vmul.f32 %v860, 0.25
    %v891 = vmul.f32 %v886, 0.25
    %v892 = vsel %vm117, %v888, -1000000.0
    %v893 = vsel %vm118, %v889, -1000000.0
    %v894 = vsel %vm117, %v890, -1000000.0
    %v895 = vsel %vm118, %v891, -1000000.0
    %v896 = vsel %vm286, %v892, -inf
    %897 = vmax.xlane.f32.xlu0 %v896
    %v898 = vpop.xlane.xlu0 %897
    %v899 = vsel %vm286, %v893, -inf
    %900 = vmax.xlane.f32.xlu0 %v899
    %v901 = vpop.xlane.xlu0 %900
    %v902 = vsel %vm286, %v894, -inf
    %903 = vmax.xlane.f32.xlu0 %v902
    %v904 = vpop.xlane.xlu0 %903
    %v905 = vsel %vm286, %v895, -inf
    %906 = vmax.xlane.f32.xlu0 %v905
    %v907 = vpop.xlane.xlu0 %906
    %v908 = vsub.f32 %v892, %v898
    %v909 = vsub.f32 %v893, %v901
    %v910 = vsub.f32 %v894, %v904
    %v911 = vsub.f32 %v895, %v907
    %v912 = vmul.f32 %v908, 1.442695
    %v913 = vpow.pop %v912
    %v914 = vmul.f32 %v909, 1.442695
    %v915 = vpow.pop %v914
    %v916 = vmul.f32 %v910, 1.442695
    %v917 = vpow.pop %v916
    %v918 = vmul.f32 %v911, 1.442695
    %v919 = vpow.pop %v918
    %v920 = vsel %vm286, %v913, 0.0
    %921 = vadd.xlane.f32.xlu0 %v920
    %v922 = vpop.xlane.xlu0 %921
    %v923 = vsel %vm286, %v915, 0.0
    %924 = vadd.xlane.f32.xlu0 %v923
    %v925 = vpop.xlane.xlu0 %924
    %v926 = vsel %vm286, %v917, 0.0
    %927 = vadd.xlane.f32.xlu0 %v926
    %v928 = vpop.xlane.xlu0 %927
    %v929 = vsel %vm286, %v919, 0.0
    %930 = vadd.xlane.f32.xlu0 %v929
    %v931 = vpop.xlane.xlu0 %930
    %v932 = vrcp.pop %v922
    %v933 = vmul.f32 %v922, %v932
    %v934 = vsub.f32 1.0, %v933
    %v935 = vmul.f32 %v932, %v934
    %v936 = vadd.f32 %v932, %v935
    %vm937 = vweird.f32 %v922
    %vm938 = vweird.f32 %v932
    %vm939 = vmor %vm937, %vm938
    %v940 = vsel %vm939, %v932, %v936
    %v941 = vand.u32 2147483647, %v922
    %vm942 = vcmp.eq.f32.partialorder %v941, 8.507059e+37
    %v943 = vand.u32 %v922, 2147483648
    %v944 = vor.u32 1.1754944e-38, %v943
    %v945 = vsel %vm942, %v944, %v940
    %v946 = vmul.f32 %v913, %v945
    %v947 = vrcp.pop %v925
    %v948 = vmul.f32 %v925, %v947
    %v949 = vsub.f32 1.0, %v948
    %v950 = vmul.f32 %v947, %v949
    %v951 = vadd.f32 %v947, %v950
    %vm952 = vweird.f32 %v925
    %vm953 = vweird.f32 %v947
    %vm954 = vmor %vm952, %vm953
    %v955 = vsel %vm954, %v947, %v951
    %v956 = vand.u32 2147483647, %v925
    %vm957 = vcmp.eq.f32.partialorder %v956, 8.507059e+37
    %v958 = vand.u32 %v925, 2147483648
    %v959 = vor.u32 1.1754944e-38, %v958
    %v960 = vsel %vm957, %v959, %v955
    %v961 = vmul.f32 %v915, %v960
    %v962 = vrcp.pop %v928
    %v963 = vmul.f32 %v928, %v962
    %v964 = vsub.f32 1.0, %v963
    %v965 = vmul.f32 %v962, %v964
    %v966 = vadd.f32 %v962, %v965
    %vm967 = vweird.f32 %v928
    %vm968 = vweird.f32 %v962
    %vm969 = vmor %vm967, %vm968
    %v970 = vsel %vm969, %v962, %v966
    %v971 = vand.u32 2147483647, %v928
    %vm972 = vcmp.eq.f32.partialorder %v971, 8.507059e+37
    %v973 = vand.u32 %v928, 2147483648
    %v974 = vor.u32 1.1754944e-38, %v973
    %v975 = vsel %vm972, %v974, %v970
    %v976 = vmul.f32 %v917, %v975
    %v977 = vrcp.pop %v931
    %v978 = vmul.f32 %v931, %v977
    %v979 = vsub.f32 1.0, %v978
    %v980 = vmul.f32 %v977, %v979
    %v981 = vadd.f32 %v977, %v980
    %vm982 = vweird.f32 %v931
    %vm983 = vweird.f32 %v977
    %vm984 = vmor %vm982, %vm983
    %v985 = vsel %vm984, %v977, %v981
    %v986 = vand.u32 2147483647, %v931
    %vm987 = vcmp.eq.f32.partialorder %v986, 8.507059e+37
    %v988 = vand.u32 %v931, 2147483648
    %v989 = vor.u32 1.1754944e-38, %v988
    %v990 = vsel %vm987, %v989, %v985
    %v991 = vmul.f32 %v919, %v990
    %992 = vrot.lane.b32.xlu0 %v773, 64
    %v993 = vpop.permute.xlu0 %992
    %v996 = vsel %vm286, %v946, 0
    %998 = vmatpush.msra.mxu0 0.0
    %999 = vmatpush.msra.mxu0 0.0
    %1000 = vmatpush.msra.mxu0 0.0
    %1001 = vmatpush.msra.mxu0 0.0
    %1002 = vmatpush.msra.mxu0 0.0
    %1003 = vmatpush.msra.mxu0 0.0
    %1004 = vmatpush.msra.mxu0 0.0
    %1005 = vmatpush.msra.mxu0 0.0
    %1006 = vmatpush.msra.mxu0 0.0
    %1007 = vmatpush.msra.mxu0 0.0
    %1008 = vmatpush.msra.mxu0 0.0
    %1009 = vmatpush.msra.mxu0 0.0
    %1010 = vmatpush.msra.mxu0 0.0
    %1011 = vmatpush.msra.mxu0 0.0
    %1012 = vmatpush.msra.mxu0 0.0
    %1013 = vmatpush.msra.mxu0 %v993
    %1014 = vmatmul.f32.gmra.mxu0 %v996
    %v1015 = vpop.f32.mrf.mxu0
    %v1016 = vadd.f32 0.0, %v1015
    %1017 = vdwg.mxu0
    %1018 = vrot.lane.b32.xlu0 %v776, 64
    %v1019 = vpop.permute.xlu0 %1018
    %v1022 = vsel %vm286, %v961, 0
    %1024 = vmatpush.msra.mxu0 0.0
    %1025 = vmatpush.msra.mxu0 0.0
    %1026 = vmatpush.msra.mxu0 0.0
    %1027 = vmatpush.msra.mxu0 0.0
    %1028 = vmatpush.msra.mxu0 0.0
    %1029 = vmatpush.msra.mxu0 0.0
    %1030 = vmatpush.msra.mxu0 0.0
    %1031 = vmatpush.msra.mxu0 0.0
    %1032 = vmatpush.msra.mxu0 0.0
    %1033 = vmatpush.msra.mxu0 0.0
    %1034 = vmatpush.msra.mxu0 0.0
    %1035 = vmatpush.msra.mxu0 0.0
    %1036 = vmatpush.msra.mxu0 0.0
    %1037 = vmatpush.msra.mxu0 0.0
    %1038 = vmatpush.msra.mxu0 0.0
    %1039 = vmatpush.msra.mxu0 %v1019
    %1040 = vmatmul.f32.gmra.mxu0 %v1022
    %v1041 = vpop.f32.mrf.mxu0
    %v1042 = vadd.f32 0.0, %v1041
    %1043 = vdwg.mxu0
    %1044 = vrot.lane.b32.xlu0 %v781, 64
    %v1045 = vpop.permute.xlu0 %1044
    %v1048 = vsel %vm286, %v976, 0
    %1050 = vmatpush.msra.mxu0 0.0
    %1051 = vmatpush.msra.mxu0 0.0
    %1052 = vmatpush.msra.mxu0 0.0
    %1053 = vmatpush.msra.mxu0 0.0
    %1054 = vmatpush.msra.mxu0 0.0
    %1055 = vmatpush.msra.mxu0 0.0
    %1056 = vmatpush.msra.mxu0 0.0
    %1057 = vmatpush.msra.mxu0 0.0
    %1058 = vmatpush.msra.mxu0 0.0
    %1059 = vmatpush.msra.mxu0 0.0
    %1060 = vmatpush.msra.mxu0 0.0
    %1061 = vmatpush.msra.mxu0 0.0
    %1062 = vmatpush.msra.mxu0 0.0
    %1063 = vmatpush.msra.mxu0 0.0
    %1064 = vmatpush.msra.mxu0 0.0
    %1065 = vmatpush.msra.mxu0 %v1045
    %1066 = vmatmul.f32.gmra.mxu0 %v1048
    %v1067 = vpop.f32.mrf.mxu0
    %v1068 = vadd.f32 0.0, %v1067
    %1069 = vdwg.mxu0
    %1070 = vrot.lane.b32.xlu0 %v783, 64
    %v1071 = vpop.permute.xlu0 %1070
    %v1074 = vsel %vm286, %v991, 0
    %1076 = vmatpush.msra.mxu0 0.0
    %1077 = vmatpush.msra.mxu0 0.0
    %1078 = vmatpush.msra.mxu0 0.0
    %1079 = vmatpush.msra.mxu0 0.0
    %1080 = vmatpush.msra.mxu0 0.0
    %1081 = vmatpush.msra.mxu0 0.0
    %1082 = vmatpush.msra.mxu0 0.0
    %1083 = vmatpush.msra.mxu0 0.0
    %1084 = vmatpush.msra.mxu0 0.0
    %1085 = vmatpush.msra.mxu0 0.0
    %1086 = vmatpush.msra.mxu0 0.0
    %1087 = vmatpush.msra.mxu0 0.0
    %1088 = vmatpush.msra.mxu0 0.0
    %1089 = vmatpush.msra.mxu0 0.0
    %1090 = vmatpush.msra.mxu0 0.0
    %1091 = vmatpush.msra.mxu0 %v1071
    %1092 = vmatmul.f32.gmra.mxu0 %v1074
    %v1093 = vpop.f32.mrf.mxu0
    %v1094 = vadd.f32 0.0, %v1093
    %1095 = vdwg.mxu0
    %v1096 = vld [vmem:[%s730 + $0x8] sm:$0xff]
    %v1097 = vld [vmem:[%s730 + $0x20] sm:$0xff]
    %v1099 = vsel %vm175, %v1016, 0
    %v1102 = vsel %vm175, %v1042, 0
    %1104 = vmatpush.msra.mxu0 0.0
    %1105 = vmatpush.msra.mxu0 0.0
    %1106 = vmatpush.msra.mxu0 0.0
    %1107 = vmatpush.msra.mxu0 0.0
    %1108 = vmatpush.msra.mxu0 0.0
    %1109 = vmatpush.msra.mxu0 0.0
    %1110 = vmatpush.msra.mxu0 0.0
    %1111 = vmatpush.msra.mxu0 0.0
    %1112 = vmatpush.msra.mxu0 0.0
    %1113 = vmatpush.msra.mxu0 0.0
    %1114 = vmatpush.msra.mxu0 0.0
    %1115 = vmatpush.msra.mxu0 0.0
    %1116 = vmatpush.msra.mxu0 0.0
    %1117 = vmatpush.msra.mxu0 0.0
    %1118 = vmatpush.msra.mxu0 %v1097
    %1119 = vmatpush.msra.mxu0 %v1096
    %1120 = vmatmul.f32.gmra.mxu0 %v1099
    %v1121 = vpop.f32.mrf.mxu0
    %v1122 = vadd.f32 0.0, %v1121
    %1123 = vmatmul.f32.gmra.mxu0 %v1102
    %v1124 = vpop.f32.mrf.mxu0
    %v1125 = vadd.f32 0.0, %v1124
    %1126 = vdwg.mxu0
    %v1127 = vperm.slane %v747, 1
    %v1128 = vadd.f32 %v1127, %v1122
    %v1129 = vadd.f32 %v1127, %v1125
    %v1130 = vld [vmem:[%s730 + $0x38] sm:$0xff]
    %v1131 = vld [vmem:[%s730 + $0x50] sm:$0xff]
    %v1133 = vsel %vm175, %v1068, 0
    %v1136 = vsel %vm175, %v1094, 0
    %1138 = vmatpush.msra.mxu0 0.0
    %1139 = vmatpush.msra.mxu0 0.0
    %1140 = vmatpush.msra.mxu0 0.0
    %1141 = vmatpush.msra.mxu0 0.0
    %1142 = vmatpush.msra.mxu0 0.0
    %1143 = vmatpush.msra.mxu0 0.0
    %1144 = vmatpush.msra.mxu0 0.0
    %1145 = vmatpush.msra.mxu0 0.0
    %1146 = vmatpush.msra.mxu0 0.0
    %1147 = vmatpush.msra.mxu0 0.0
    %1148 = vmatpush.msra.mxu0 0.0
    %1149 = vmatpush.msra.mxu0 0.0
    %1150 = vmatpush.msra.mxu0 0.0
    %1151 = vmatpush.msra.mxu0 0.0
    %1152 = vmatpush.msra.mxu0 %v1131
    %1153 = vmatpush.msra.mxu0 %v1130
    %1154 = vmatmul.f32.gmra.mxu0 %v1133
    %v1155 = vpop.f32.mrf.mxu0
    %v1156 = vadd.f32 0.0, %v1155
    %1157 = vmatmul.f32.gmra.mxu0 %v1136
    %v1158 = vpop.f32.mrf.mxu0
    %v1159 = vadd.f32 0.0, %v1158
    %1160 = vdwg.mxu0
    %v1161 = vadd.f32 %v1128, %v1156
    %v1162 = vadd.f32 %v1129, %v1159
    %v1163 = vadd.f32 %v728, %v1161
    %v1164 = vadd.f32 %v729, %v1162
    %v1165 = vsel %vm137, %v1163, 0.0
    %1166 = vadd.xlane.f32.xlu0 %v1165
    %v1167 = vpop.xlane.xlu0 %1166
    %v1168 = vsel %vm137, %v1164, 0.0
    %1169 = vadd.xlane.f32.xlu0 %v1168
    %v1170 = vpop.xlane.xlu0 %1169
    %v1171 = vmul.f32 %v1167, %v568
    %v1172 = vmul.f32 %v1170, %v568
    %v1173 = vsub.f32 %v1163, %v1171
    %v1174 = vsub.f32 %v1164, %v1172
    %v1175 = vmul.f32 %v1173, %v1173
    %v1176 = vmul.f32 %v1174, %v1174
    %v1177 = vsel %vm137, %v1175, 0.0
    %1178 = vadd.xlane.f32.xlu0 %v1177
    %v1179 = vpop.xlane.xlu0 %1178
    %v1180 = vsel %vm137, %v1176, 0.0
    %1181 = vadd.xlane.f32.xlu0 %v1180
    %v1182 = vpop.xlane.xlu0 %1181
    %v1183 = vmul.f32 %v1179, %v568
    %v1184 = vmul.f32 %v1182, %v568
    %v1185 = vadd.f32 %v1183, 1e-05
    %v1186 = vadd.f32 %v1184, 1e-05
    %v1187 = vrsqrt.pop %v1185
    %v1188 = vmul.f32 %v1187, %v1185
    %v1189 = vmul.f32 %v1188, %v1187
    %v1190 = vmul.f32 0.5, %v1189
    %v1191 = vsub.f32 1.5, %v1190
    %v1192 = vmul.f32 %v1187, %v1191
    %vm1193 = vweird.f32 %v1185
    %vm1194 = vweird.f32 %v1187
    %vm1195 = vmor %vm1193, %vm1194
    %v1196 = vsel %vm1195, %v1187, %v1192
    %v1197 = vrsqrt.pop %v1186
    %v1198 = vmul.f32 %v1197, %v1186
    %v1199 = vmul.f32 %v1198, %v1197
    %v1200 = vmul.f32 0.5, %v1199
    %v1201 = vsub.f32 1.5, %v1200
    %v1202 = vmul.f32 %v1197, %v1201
    %vm1203 = vweird.f32 %v1186
    %vm1204 = vweird.f32 %v1197
    %vm1205 = vmor %vm1203, %vm1204
    %v1206 = vsel %vm1205, %v1197, %v1202
    %v1207 = vmul.f32 %v1173, %v1196
    %v1208 = vmul.f32 %v1174, %v1206
    %v1209 = vperm.slane %v747, 2
    %v1210 = vmul.f32 %v1207, %v1209
    %v1211 = vmul.f32 %v1208, %v1209
    %v1212 = vperm.slane %v747, 3
    %v1213 = vadd.f32 %v1210, %v1212
    %v1214 = vadd.f32 %v1211, %v1212
    %v1215 = vperm.slane %v747, 4
    %v1217 = vsel %vm137, %v1213, 0
    %v1220 = vsel %vm137, %v1214, 0
    %1222 = vmatpush.msra.mxu0 0.0
    %1223 = vmatpush.msra.mxu0 0.0
    %1224 = vmatpush.msra.mxu0 0.0
    %1225 = vmatpush.msra.mxu0 0.0
    %1226 = vmatpush.msra.mxu0 0.0
    %1227 = vmatpush.msra.mxu0 0.0
    %1228 = vmatpush.msra.mxu0 0.0
    %1229 = vmatpush.msra.mxu0 0.0
    %1230 = vmatpush.msra.mxu0 0.0
    %1231 = vmatpush.msra.mxu0 0.0
    %1232 = vmatpush.msra.mxu0 0.0
    %1233 = vmatpush.msra.mxu0 0.0
    %1234 = vmatpush.msra.mxu0 %v738
    %1235 = vmatpush.msra.mxu0 %v737
    %1236 = vmatpush.msra.mxu0 %v736
    %1237 = vmatpush.msra.mxu0 %v735
    %1238 = vmatmul.f32.gmra.mxu0 %v1217
    %v1239 = vpop.f32.mrf.mxu0
    %v1240 = vadd.f32 %v1215, %v1239
    %1241 = vmatmul.f32.gmra.mxu0 %v1220
    %v1242 = vpop.f32.mrf.mxu0
    %v1243 = vadd.f32 %v1215, %v1242
    %1244 = vdwg.mxu0
    %v1245 = vmax.f32 %v1240, 0.0
    %v1246 = vmax.f32 %v1243, 0.0
    %v1248 = vsel %vm645, %v1245, 0
    %v1251 = vsel %vm645, %v1246, 0
    %1253 = vmatpush.msra.mxu0 0.0
    %1254 = vmatpush.msra.mxu0 0.0
    %1255 = vmatpush.msra.mxu0 0.0
    %1256 = vmatpush.msra.mxu0 0.0
    %1257 = vmatpush.msra.mxu0 0.0
    %1258 = vmatpush.msra.mxu0 0.0
    %1259 = vmatpush.msra.mxu0 0.0
    %1260 = vmatpush.msra.mxu0 0.0
    %1261 = vmatpush.msra.mxu0 %v746
    %1262 = vmatpush.msra.mxu0 %v745
    %1263 = vmatpush.msra.mxu0 %v744
    %1264 = vmatpush.msra.mxu0 %v743
    %1265 = vmatpush.msra.mxu0 %v742
    %1266 = vmatpush.msra.mxu0 %v741
    %1267 = vmatpush.msra.mxu0 %v740
    %1268 = vmatpush.msra.mxu0 %v739
    %1269 = vmatmul.f32.gmra.mxu0 %v1248
    %v1270 = vpop.f32.mrf.mxu0
    %v1271 = vadd.f32 0.0, %v1270
    %1272 = vmatmul.f32.gmra.mxu0 %v1251
    %v1273 = vpop.f32.mrf.mxu0
    %v1274 = vadd.f32 0.0, %v1273
    %1275 = vdwg.mxu0
    %v1276 = vadd.f32 %v1213, %v1271
    %v1277 = vadd.f32 %v1214, %v1274
    %v1278 = vperm.slane %v747, 5
    %v1279 = vadd.f32 %v1276, %v1278
    %v1280 = vadd.f32 %v1277, %v1278
    %v1281 = vsel %vm137, %v1279, 0.0
    %1282 = vadd.xlane.f32.xlu0 %v1281
    %v1283 = vpop.xlane.xlu0 %1282
    %v1284 = vsel %vm137, %v1280, 0.0
    %1285 = vadd.xlane.f32.xlu0 %v1284
    %v1286 = vpop.xlane.xlu0 %1285
    %v1287 = vmul.f32 %v1283, %v568
    %v1288 = vmul.f32 %v1286, %v568
    %v1289 = vsub.f32 %v1279, %v1287
    %v1290 = vsub.f32 %v1280, %v1288
    %v1291 = vmul.f32 %v1289, %v1289
    %v1292 = vmul.f32 %v1290, %v1290
    %v1293 = vsel %vm137, %v1291, 0.0
    %1294 = vadd.xlane.f32.xlu0 %v1293
    %v1295 = vpop.xlane.xlu0 %1294
    %v1296 = vsel %vm137, %v1292, 0.0
    %1297 = vadd.xlane.f32.xlu0 %v1296
    %v1298 = vpop.xlane.xlu0 %1297
    %v1299 = vmul.f32 %v1295, %v568
    %v1300 = vmul.f32 %v1298, %v568
    %v1301 = vadd.f32 %v1299, 1e-05
    %v1302 = vadd.f32 %v1300, 1e-05
    %v1303 = vrsqrt.pop %v1301
    %v1304 = vmul.f32 %v1303, %v1301
    %v1305 = vmul.f32 %v1304, %v1303
    %v1306 = vmul.f32 0.5, %v1305
    %v1307 = vsub.f32 1.5, %v1306
    %v1308 = vmul.f32 %v1303, %v1307
    %vm1309 = vweird.f32 %v1301
    %vm1310 = vweird.f32 %v1303
    %vm1311 = vmor %vm1309, %vm1310
    %v1312 = vsel %vm1311, %v1303, %v1308
    %v1313 = vrsqrt.pop %v1302
    %v1314 = vmul.f32 %v1313, %v1302
    %v1315 = vmul.f32 %v1314, %v1313
    %v1316 = vmul.f32 0.5, %v1315
    %v1317 = vsub.f32 1.5, %v1316
    %v1318 = vmul.f32 %v1313, %v1317
    %vm1319 = vweird.f32 %v1302
    %vm1320 = vweird.f32 %v1313
    %vm1321 = vmor %vm1319, %vm1320
    %v1322 = vsel %vm1321, %v1313, %v1318
    %v1323 = vmul.f32 %v1289, %v1312
    %v1324 = vmul.f32 %v1290, %v1322
    %v1325 = vperm.slane %v747, 6
    %v1326 = vmul.f32 %v1323, %v1325
    %v1327 = vmul.f32 %v1324, %v1325
    %v1328 = vperm.slane %v747, 7
    %v1329 = vadd.f32 %v1326, %v1328
    %v1330 = vadd.f32 %v1327, %v1328
    %v1331 = vsel %vm137, %v1329, 0.0
    %v1332 = vsel %vm137, %v1330, 0.0
    %1333 = vst [vmem:[#allocation5] sm:$0xff] %v1331
    %1334 = vst [vmem:[#allocation5 + $0x8] sm:$0xff] %v1332
    // Predicated region
    $region18: #{tpu_custom_call.1} parent=1 // pred_check
      _
    $region19: #{tpu_custom_call.1} parent=1 // pred_check_branch
      %1336 = sbr.rel (0) target = $region21
    $region20: #{tpu_custom_call.1} parent=1 // pred_region
      %1338 = vsyncadd [#allocation4], 0
      %s1339 = sshll.u32 [#allocation5], 4
      %s1340 = int_to_ptr.vmem [resolvable:$true] %s1339
      %s1341 = sshll.u32 %s3, 4
      %s1342 = int_to_ptr.hbm [resolvable:$true] %s1341
      %1347 = dma.vmem_to_hbm [thread:$0]  %s1340, 256, %s1342, [#allocation4], 128, 128, 8
    $region21: #{tpu_custom_call.1} parent=1 // pred_fallthru
      _
    // Predicated region
    $region22: #{tpu_custom_call.1} parent=1 // pred_check
      _
    $region23: #{tpu_custom_call.1} parent=1 // pred_check_branch
      %1349 = sbr.rel (0) target = $region25
    $region24: #{tpu_custom_call.1} parent=1 // pred_region
      %1351 = dma.done [#allocation4], 256
    $region25: #{tpu_custom_call.1} parent=1 // pred_fallthru
      _
    %1352 = vsyncpa [#allocation3], 1
    %1353 = vsyncpa [#allocation4], 1

</llo_original>
